<compile_context>
chip_gen: v5e
topology: v5e:2x2
jax: 0.10.0
libtpu: 0.0.40
codegen_flags: <defaults>
</compile_context>

<pallas_src>
import math

import jax
import jax.numpy as jnp
from jax.experimental import pallas as pl
from jax.experimental.pallas import tpu as pltpu


def _pointer_kernel(x_ref,                       # (L*TB, L)   rows (t, b): time-major in-tile
                    ewih_ref, ewhh_ref, eb_ref,  # (L, 4H), (H, 4H), (1, 4H)
                    dwih_ref, dwhh_ref, db_ref,  # (L, 4H), (H, 4H), (1, 4H)
                    w1_ref, w2t_ref, vtb_ref,    # (H, W), (H, L*W), (L*W, L)
                    out_ref):                    # (L*TB, L)   rows (i, b): log-probs, ptr on lanes
    LTB, L = x_ref.shape
    TB = LTB // L
    H = ewhh_ref.shape[0]
    W = w1_ref.shape[1]
    f32 = jnp.float32

    ewhh = ewhh_ref[...]
    dwhh = dwhh_ref[...]
    # Hoist loop-invariant bias broadcasts out of the recurrences.
    eb = jnp.broadcast_to(eb_ref[...], (TB, 4 * H))
    db = jnp.broadcast_to(db_ref[...], (TB, 4 * H))

    # ---- hoisted input projections: one well-filled MXU op each, off the serial chain ----
    x2 = x_ref[...]
    ex = jnp.dot(x2, ewih_ref[...], preferred_element_type=f32)   # (L*TB, 4H)
    dx = jnp.dot(x2, dwih_ref[...], preferred_element_type=f32)   # (L*TB, 4H)

    def lstm_step(xg, h, c, whh, b):
        # Recurrence-critical op is only (TB,H)@(H,4H); the x-part was precomputed above.
        g = xg + jnp.dot(h, whh, preferred_element_type=f32) + b   # (TB, 4H)
        # Full-width activations, then cheap lane slices (PyTorch gate order i, f, g, o).
        sg = jax.nn.sigmoid(g)
        tg = jnp.tanh(g)
        c_new = sg[:, H:2 * H] * c + sg[:, 0:H] * tg[:, 2 * H:3 * H]
        h_new = sg[:, 3 * H:4 * H] * jnp.tanh(c_new)
        return h_new, c_new

    h = jnp.zeros((TB, H), f32)
    c = jnp.zeros((TB, H), f32)

    # ----------------------- encoder recurrence (static unroll) -----------------------
    hs_enc = []
    for t in range(L):
        h, c = lstm_step(ex[t * TB:(t + 1) * TB, :], h, c, ewhh, eb)
        hs_enc.append(h)
    hidden, cell = h, c          # hidden == encoder_output[:, -1, :]; cell == final enc cell

    # ---------- decoder recurrence: cell stays frozen at the encoder's final cell ----------
    hs_dec = []
    h = hidden
    for i in range(L):
        h, _ = lstm_step(dx[i * TB:(i + 1) * TB, :], h, cell, dwhh, db)
        hs_dec.append(h)

    henc = jnp.concatenate(hs_enc, axis=0)       # (L*TB, H), rows (t, b)
    hdec = jnp.concatenate(hs_dec, axis=0)       # (L*TB, H), rows (i, b)

    # ----------------- batched pointer attention, fully lane-dense -----------------
    eproj = jnp.dot(henc, w1_ref[...], preferred_element_type=f32)    # (L*TB, W)
    # W2 pre-tiled along lanes in the wrapper -> decoder projection lands directly
    # in the (L_dec*TB, L_enc*W) slab layout.
    dtile = jnp.dot(hdec, w2t_ref[...], preferred_element_type=f32)   # (L*TB, L*W)

    # Rearrange eproj rows (t, b) into lanes: (TB, L*W), then replicate down the
    # sublanes once per decoder step.
    e_flat = jnp.concatenate(
        [eproj[t * TB:(t + 1) * TB, :] for t in range(L)], axis=1)    # (TB, L*W)
    e_bro = jnp.concatenate([e_flat] * L, axis=0)                     # (L*TB, L*W)

    s = jnp.tanh(dtile + e_bro)                                       # (L*TB, L*W): dense vregs
    # W-reduction on the MXU against the block-diagonal vt; output is already in
    # (decoder-step*batch, pointer) softmax layout.
    scores = jnp.dot(s, vtb_ref[...], preferred_element_type=f32)     # (L*TB, L)

    m = jnp.max(scores, axis=-1, keepdims=True)
    z = scores - m
    lse = jnp.log(jnp.sum(jnp.exp(z), axis=-1, keepdims=True))
    out_ref[...] = z - lse                        # one lane-dense bulk store


def pointer_layer_forward(x, params, *, tile_b=None):
    """x: (B, L, L) float32, batch-first like the PyTorch module. Returns (B, L, L)."""
    B, L, L2 = x.shape
    assert L == L2, "input_size must equal decoder_seq_len"
    H = params["enc_w_hh"].shape[1]
    W = params["W1"].shape[0]

    TB = min(B, 8) if tile_b is None else tile_b
    nT = pl.cdiv(B, TB)
    B_pad = nT * TB

    x = x.astype(jnp.float32)
    if B_pad != B:
        x = jnp.concatenate([x, jnp.zeros((B_pad - B, L, L), jnp.float32)], axis=0)
    # Pack into batch tiles, time-major within each tile: row = t*TB + b_local.
    x3 = x.reshape(nT, TB, L, L).transpose(0, 2, 1, 3).reshape(nT, L * TB, L)

    ewih = params["enc_w_ih"].T.astype(jnp.float32)                       # (L, 4H)
    ewhh = params["enc_w_hh"].T.astype(jnp.float32)                       # (H, 4H)
    eb = (params["enc_b_ih"] + params["enc_b_hh"]).reshape(1, 4 * H).astype(jnp.float32)
    dwih = params["dec_w_ih"].T.astype(jnp.float32)                       # (L, 4H)
    dwhh = params["dec_w_hh"].T.astype(jnp.float32)                       # (H, 4H)
    db = (params["dec_b_ih"] + params["dec_b_hh"]).reshape(1, 4 * H).astype(jnp.float32)
    w1 = params["W1"].T.astype(jnp.float32)                               # (H, W)
    w2t = jnp.tile(params["W2"].T.astype(jnp.float32), (1, L))            # (H, L*W)
    vt = params["vt"].reshape(W).astype(jnp.float32)
    # Block-diagonal vt: vtb[t*W + w, t'] = vt[w] * (t == t').
    vtb = (jnp.eye(L, dtype=jnp.float32)[:, None, :] * vt[None, :, None]).reshape(L * W, L)

    out3 = pl.pallas_call(
        _pointer_kernel,
        out_shape=jax.ShapeDtypeStruct((nT, L * TB, L), jnp.float32),
        grid=(nT,),
        in_specs=[
            pl.BlockSpec((None, L * TB, L), lambda j: (j, 0, 0)),   # x tile
            pl.BlockSpec((L, 4 * H), lambda j: (0, 0)),             # enc W_ih
            pl.BlockSpec((H, 4 * H), lambda j: (0, 0)),             # enc W_hh
            pl.BlockSpec((1, 4 * H), lambda j: (0, 0)),             # enc bias
            pl.BlockSpec((L, 4 * H), lambda j: (0, 0)),             # dec W_ih
            pl.BlockSpec((H, 4 * H), lambda j: (0, 0)),             # dec W_hh
            pl.BlockSpec((1, 4 * H), lambda j: (0, 0)),             # dec bias
            pl.BlockSpec((H, W), lambda j: (0, 0)),                 # W1
            pl.BlockSpec((H, L * W), lambda j: (0, 0)),             # W2 lane-tiled
            pl.BlockSpec((L * W, L), lambda j: (0, 0)),             # block-diag vt
        ],
        out_specs=pl.BlockSpec((None, L * TB, L), lambda j: (j, 0, 0)),
        compiler_params=pltpu.CompilerParams(
            dimension_semantics=("parallel",)),
    )(x3, ewih, ewhh, eb, dwih, dwhh, db, w1, w2t, vtb)

    # Unpack (tile, (dec_step, b_local), ptr) -> (B, dec_step, ptr).
    out = out3.reshape(nT, L, TB, L).transpose(0, 2, 1, 3).reshape(B_pad, L, L)
    return out[:B]


def pointer_layer_reference(x, params):
    """Pure-JAX reference (no Pallas) mirroring the PyTorch forward."""
    B, L, _ = x.shape
    H = params["enc_w_hh"].shape[1]
    ewih, ewhh = params["enc_w_ih"].T, params["enc_w_hh"].T
    dwih, dwhh = params["dec_w_ih"].T, params["dec_w_hh"].T
    eb = params["enc_b_ih"] + params["enc_b_hh"]
    db = params["dec_b_ih"] + params["dec_b_hh"]
    w1, w2 = params["W1"].T, params["W2"].T
    vt = params["vt"].reshape(-1)

    def step(x_t, h, c, wih, whh, b):
        g = x_t @ wih + h @ whh + b
        i = jax.nn.sigmoid(g[:, :H])
        f = jax.nn.sigmoid(g[:, H:2 * H])
        gg = jnp.tanh(g[:, 2 * H:3 * H])
        o = jax.nn.sigmoid(g[:, 3 * H:])
        c = f * c + i * gg
        return o * jnp.tanh(c), c

    h = jnp.zeros((B, H), jnp.float32)
    c = jnp.zeros((B, H), jnp.float32)
    enc = []
    for t in range(L):
        h, c = step(x[:, t, :], h, c, ewih, ewhh, eb)
        enc.append(h)
    enc = jnp.stack(enc, axis=0)                                 # (L, B, H)
    hidden, cell = h, c

    outs = []
    for i in range(L):
        hidden, _ = step(x[:, i, :], hidden, cell, dwih, dwhh, db)
        s = jnp.tanh(enc @ w1 + (hidden @ w2)[None, :, :])       # (L, B, W)
        sc = jnp.einsum("lbw,w->bl", s, vt)                      # (B, L)
        outs.append(jax.nn.log_softmax(sc, axis=-1))
    return jnp.stack(outs, axis=1)                               # (B, L, L)


if __name__ == "__main__":
    B, L, H, Wsz = 4, 8, 32, 16   # batch, decoder_seq_len(==input_size), hidden, weight_size

    key = jax.random.PRNGKey(0)
    ks = jax.random.split(key, 12)
    k_lstm = 1.0 / math.sqrt(H)
    k_lin_h = 1.0 / math.sqrt(H)
    k_lin_w = 1.0 / math.sqrt(Wsz)

    def u(k, shape, s):
        return jax.random.uniform(k, shape, jnp.float32, -s, s)

    params = dict(
        enc_w_ih=u(ks[0], (4 * H, L), k_lstm),
        enc_w_hh=u(ks[1], (4 * H, H), k_lstm),
        enc_b_ih=u(ks[2], (4 * H,), k_lstm),
        enc_b_hh=u(ks[3], (4 * H,), k_lstm),
        dec_w_ih=u(ks[4], (4 * H, L), k_lstm),
        dec_w_hh=u(ks[5], (4 * H, H), k_lstm),
        dec_b_ih=u(ks[6], (4 * H,), k_lstm),
        dec_b_hh=u(ks[7], (4 * H,), k_lstm),
        W1=u(ks[8], (Wsz, H), k_lin_h),
        W2=u(ks[9], (Wsz, H), k_lin_h),
        vt=u(ks[10], (1, Wsz), k_lin_w),
    )
    x = jax.random.normal(ks[11], (B, L, L), jnp.float32)

    # tile_b=2 -> grid=(2,): exercises the batch-parallel grid (v7x dual-TC path).
    probs = pointer_layer_forward(x, params, tile_b=2)
    probs = jax.block_until_ready(probs)

    assert probs.shape == (B, L, L)
    assert bool(jnp.all(jnp.isfinite(probs)))
    # rows are log_softmax -> exp-sums to 1
    assert bool(jnp.allclose(jnp.exp(probs).sum(-1), 1.0, atol=1e-4))
    # loose tolerance accounts for MXU default-precision differences vs the XLA reference
    ref = pointer_layer_reference(x, params)
    assert bool(jnp.allclose(probs, ref, atol=5e-2, rtol=0.0)), \
        float(jnp.max(jnp.abs(probs - ref)))
    print("KERNEL_OK")
</pallas_src>

<mosaic_0001>
module attributes {stable_mosaic.version = 11 : i64} {
  func.func @_pointer_kernel(%arg0: i32, %arg1: memref<1x16x8xf32, #tpu.memory_space<vmem>>, %arg2: memref<8x128xf32, #tpu.memory_space<vmem>>, %arg3: memref<32x128xf32, #tpu.memory_space<vmem>>, %arg4: memref<1x128xf32, #tpu.memory_space<vmem>>, %arg5: memref<8x128xf32, #tpu.memory_space<vmem>>, %arg6: memref<32x128xf32, #tpu.memory_space<vmem>>, %arg7: memref<1x128xf32, #tpu.memory_space<vmem>>, %arg8: memref<32x16xf32, #tpu.memory_space<vmem>>, %arg9: memref<32x128xf32, #tpu.memory_space<vmem>>, %arg10: memref<128x8xf32, #tpu.memory_space<vmem>>, %arg11: memref<1x16x8xf32, #tpu.memory_space<vmem>>) attributes {dimension_semantics = [#tpu.dimension_semantics<parallel>], iteration_bounds = array<i64: 2>, scalar_prefetch = 0 : i64, scratch_operands = 0 : i64, tpu.core_type = #tpu.core_type<tc>, window_params = [{transform_indices = @transform_0, window_bounds = array<i64: 1, 16, 8>}, {pipeline_mode = #tpu.pipeline_mode<synchronous>, transform_indices = @transform_1, window_bounds = array<i64: 8, 128>}, {pipeline_mode = #tpu.pipeline_mode<synchronous>, transform_indices = @transform_2, window_bounds = array<i64: 32, 128>}, {pipeline_mode = #tpu.pipeline_mode<synchronous>, transform_indices = @transform_3, window_bounds = array<i64: 1, 128>}, {pipeline_mode = #tpu.pipeline_mode<synchronous>, transform_indices = @transform_4, window_bounds = array<i64: 8, 128>}, {pipeline_mode = #tpu.pipeline_mode<synchronous>, transform_indices = @transform_5, window_bounds = array<i64: 32, 128>}, {pipeline_mode = #tpu.pipeline_mode<synchronous>, transform_indices = @transform_6, window_bounds = array<i64: 1, 128>}, {pipeline_mode = #tpu.pipeline_mode<synchronous>, transform_indices = @transform_7, window_bounds = array<i64: 32, 16>}, {pipeline_mode = #tpu.pipeline_mode<synchronous>, transform_indices = @transform_8, window_bounds = array<i64: 32, 128>}, {pipeline_mode = #tpu.pipeline_mode<synchronous>, transform_indices = @transform_9, window_bounds = array<i64: 128, 8>}, {transform_indices = @transform_10, window_bounds = array<i64: 1, 16, 8>}]} {
    %c0 = arith.constant 0 : index
    %c0_0 = arith.constant 0 : index
    %0 = vector.load %arg3[%c0, %c0_0] : memref<32x128xf32, #tpu.memory_space<vmem>>, vector<32x128xf32>
    %c0_1 = arith.constant 0 : index
    %c0_2 = arith.constant 0 : index
    %1 = vector.load %arg6[%c0_1, %c0_2] : memref<32x128xf32, #tpu.memory_space<vmem>>, vector<32x128xf32>
    %c0_3 = arith.constant 0 : index
    %c0_4 = arith.constant 0 : index
    %2 = vector.load %arg4[%c0_3, %c0_4] : memref<1x128xf32, #tpu.memory_space<vmem>>, vector<1x128xf32>
    %3 = vector.shape_cast %2 : vector<1x128xf32> to vector<1x128xf32>
    %4 = vector.broadcast %3 : vector<1x128xf32> to vector<2x128xf32>
    %c0_5 = arith.constant 0 : index
    %c0_6 = arith.constant 0 : index
    %5 = vector.load %arg7[%c0_5, %c0_6] : memref<1x128xf32, #tpu.memory_space<vmem>>, vector<1x128xf32>
    %6 = vector.shape_cast %5 : vector<1x128xf32> to vector<1x128xf32>
    %7 = vector.broadcast %6 : vector<1x128xf32> to vector<2x128xf32>
    %c0_7 = arith.constant 0 : index
    %c0_8 = arith.constant 0 : index
    %c0_9 = arith.constant 0 : index
    %8 = vector.load %arg1[%c0_7, %c0_8, %c0_9] : memref<1x16x8xf32, #tpu.memory_space<vmem>>, vector<1x16x8xf32>
    %9 = vector.shape_cast %8 : vector<1x16x8xf32> to vector<16x8xf32>
    %c0_10 = arith.constant 0 : index
    %c0_11 = arith.constant 0 : index
    %10 = vector.load %arg2[%c0_10, %c0_11] : memref<8x128xf32, #tpu.memory_space<vmem>>, vector<8x128xf32>
    %cst = arith.constant dense<0.000000e+00> : vector<16x128xf32>
    %11 = tpu.matmul %9, %10, %cst {dimension_numbers = #tpu.dot_dimension_numbers<[1], [0], [0], [1], [0, 0, 1, 1], [], []>} : vector<16x8xf32>, vector<8x128xf32>, vector<16x128xf32> -> vector<16x128xf32>
    %c0_12 = arith.constant 0 : index
    %c0_13 = arith.constant 0 : index
    %12 = vector.load %arg5[%c0_12, %c0_13] : memref<8x128xf32, #tpu.memory_space<vmem>>, vector<8x128xf32>
    %cst_14 = arith.constant dense<0.000000e+00> : vector<16x128xf32>
    %13 = tpu.matmul %9, %12, %cst_14 {dimension_numbers = #tpu.dot_dimension_numbers<[1], [0], [0], [1], [0, 0, 1, 1], [], []>} : vector<16x8xf32>, vector<8x128xf32>, vector<16x128xf32> -> vector<16x128xf32>
    %cst_15 = arith.constant 0.000000e+00 : f32
    %14 = vector.broadcast %cst_15 : f32 to vector<2x32xf32>
    %cst_16 = arith.constant 0.000000e+00 : f32
    %15 = vector.broadcast %cst_16 : f32 to vector<2x32xf32>
    %16 = vector.extract_strided_slice %11 {offsets = [0, 0], sizes = [2, 128], strides = [1, 1]} : vector<16x128xf32> to vector<2x128xf32>
    %cst_17 = arith.constant dense<0.000000e+00> : vector<2x128xf32>
    %17 = tpu.matmul %14, %0, %cst_17 {dimension_numbers = #tpu.dot_dimension_numbers<[1], [0], [0], [1], [0, 0, 1, 1], [], []>} : vector<2x32xf32>, vector<32x128xf32>, vector<2x128xf32> -> vector<2x128xf32>
    %18 = arith.addf %16, %17 : vector<2x128xf32>
    %19 = arith.addf %18, %4 : vector<2x128xf32>
    %20 = arith.negf %19 : vector<2x128xf32>
    %21 = math.exp %20 : vector<2x128xf32>
    %cst_18 = arith.constant 1.000000e+00 : f32
    %22 = vector.broadcast %cst_18 : f32 to vector<2x128xf32>
    %23 = arith.addf %22, %21 : vector<2x128xf32>
    %24 = arith.divf %22, %23 : vector<2x128xf32>
    %25 = math.tanh %19 : vector<2x128xf32>
    %26 = vector.extract_strided_slice %24 {offsets = [0, 32], sizes = [2, 32], strides = [1, 1]} : vector<2x128xf32> to vector<2x32xf32>
    %27 = arith.mulf %26, %15 : vector<2x32xf32>
    %28 = vector.extract_strided_slice %24 {offsets = [0, 0], sizes = [2, 32], strides = [1, 1]} : vector<2x128xf32> to vector<2x32xf32>
    %29 = vector.extract_strided_slice %25 {offsets = [0, 64], sizes = [2, 32], strides = [1, 1]} : vector<2x128xf32> to vector<2x32xf32>
    %30 = arith.mulf %28, %29 : vector<2x32xf32>
    %31 = arith.addf %27, %30 : vector<2x32xf32>
    %32 = vector.extract_strided_slice %24 {offsets = [0, 96], sizes = [2, 32], strides = [1, 1]} : vector<2x128xf32> to vector<2x32xf32>
    %33 = math.tanh %31 : vector<2x32xf32>
    %34 = arith.mulf %32, %33 : vector<2x32xf32>
    %35 = vector.extract_strided_slice %11 {offsets = [2, 0], sizes = [2, 128], strides = [1, 1]} : vector<16x128xf32> to vector<2x128xf32>
    %cst_19 = arith.constant dense<0.000000e+00> : vector<2x128xf32>
    %36 = tpu.matmul %34, %0, %cst_19 {dimension_numbers = #tpu.dot_dimension_numbers<[1], [0], [0], [1], [0, 0, 1, 1], [], []>} : vector<2x32xf32>, vector<32x128xf32>, vector<2x128xf32> -> vector<2x128xf32>
    %37 = arith.addf %35, %36 : vector<2x128xf32>
    %38 = arith.addf %37, %4 : vector<2x128xf32>
    %39 = arith.negf %38 : vector<2x128xf32>
    %40 = math.exp %39 : vector<2x128xf32>
    %cst_20 = arith.constant 1.000000e+00 : f32
    %41 = vector.broadcast %cst_20 : f32 to vector<2x128xf32>
    %42 = arith.addf %41, %40 : vector<2x128xf32>
    %43 = arith.divf %41, %42 : vector<2x128xf32>
    %44 = math.tanh %38 : vector<2x128xf32>
    %45 = vector.extract_strided_slice %43 {offsets = [0, 32], sizes = [2, 32], strides = [1, 1]} : vector<2x128xf32> to vector<2x32xf32>
    %46 = arith.mulf %45, %31 : vector<2x32xf32>
    %47 = vector.extract_strided_slice %43 {offsets = [0, 0], sizes = [2, 32], strides = [1, 1]} : vector<2x128xf32> to vector<2x32xf32>
    %48 = vector.extract_strided_slice %44 {offsets = [0, 64], sizes = [2, 32], strides = [1, 1]} : vector<2x128xf32> to vector<2x32xf32>
    %49 = arith.mulf %47, %48 : vector<2x32xf32>
    %50 = arith.addf %46, %49 : vector<2x32xf32>
    %51 = vector.extract_strided_slice %43 {offsets = [0, 96], sizes = [2, 32], strides = [1, 1]} : vector<2x128xf32> to vector<2x32xf32>
    %52 = math.tanh %50 : vector<2x32xf32>
    %53 = arith.mulf %51, %52 : vector<2x32xf32>
    %54 = vector.extract_strided_slice %11 {offsets = [4, 0], sizes = [2, 128], strides = [1, 1]} : vector<16x128xf32> to vector<2x128xf32>
    %cst_21 = arith.constant dense<0.000000e+00> : vector<2x128xf32>
    %55 = tpu.matmul %53, %0, %cst_21 {dimension_numbers = #tpu.dot_dimension_numbers<[1], [0], [0], [1], [0, 0, 1, 1], [], []>} : vector<2x32xf32>, vector<32x128xf32>, vector<2x128xf32> -> vector<2x128xf32>
    %56 = arith.addf %54, %55 : vector<2x128xf32>
    %57 = arith.addf %56, %4 : vector<2x128xf32>
    %58 = arith.negf %57 : vector<2x128xf32>
    %59 = math.exp %58 : vector<2x128xf32>
    %cst_22 = arith.constant 1.000000e+00 : f32
    %60 = vector.broadcast %cst_22 : f32 to vector<2x128xf32>
    %61 = arith.addf %60, %59 : vector<2x128xf32>
    %62 = arith.divf %60, %61 : vector<2x128xf32>
    %63 = math.tanh %57 : vector<2x128xf32>
    %64 = vector.extract_strided_slice %62 {offsets = [0, 32], sizes = [2, 32], strides = [1, 1]} : vector<2x128xf32> to vector<2x32xf32>
    %65 = arith.mulf %64, %50 : vector<2x32xf32>
    %66 = vector.extract_strided_slice %62 {offsets = [0, 0], sizes = [2, 32], strides = [1, 1]} : vector<2x128xf32> to vector<2x32xf32>
    %67 = vector.extract_strided_slice %63 {offsets = [0, 64], sizes = [2, 32], strides = [1, 1]} : vector<2x128xf32> to vector<2x32xf32>
    %68 = arith.mulf %66, %67 : vector<2x32xf32>
    %69 = arith.addf %65, %68 : vector<2x32xf32>
    %70 = vector.extract_strided_slice %62 {offsets = [0, 96], sizes = [2, 32], strides = [1, 1]} : vector<2x128xf32> to vector<2x32xf32>
    %71 = math.tanh %69 : vector<2x32xf32>
    %72 = arith.mulf %70, %71 : vector<2x32xf32>
    %73 = vector.extract_strided_slice %11 {offsets = [6, 0], sizes = [2, 128], strides = [1, 1]} : vector<16x128xf32> to vector<2x128xf32>
    %cst_23 = arith.constant dense<0.000000e+00> : vector<2x128xf32>
    %74 = tpu.matmul %72, %0, %cst_23 {dimension_numbers = #tpu.dot_dimension_numbers<[1], [0], [0], [1], [0, 0, 1, 1], [], []>} : vector<2x32xf32>, vector<32x128xf32>, vector<2x128xf32> -> vector<2x128xf32>
    %75 = arith.addf %73, %74 : vector<2x128xf32>
    %76 = arith.addf %75, %4 : vector<2x128xf32>
    %77 = arith.negf %76 : vector<2x128xf32>
    %78 = math.exp %77 : vector<2x128xf32>
    %cst_24 = arith.constant 1.000000e+00 : f32
    %79 = vector.broadcast %cst_24 : f32 to vector<2x128xf32>
    %80 = arith.addf %79, %78 : vector<2x128xf32>
    %81 = arith.divf %79, %80 : vector<2x128xf32>
    %82 = math.tanh %76 : vector<2x128xf32>
    %83 = vector.extract_strided_slice %81 {offsets = [0, 32], sizes = [2, 32], strides = [1, 1]} : vector<2x128xf32> to vector<2x32xf32>
    %84 = arith.mulf %83, %69 : vector<2x32xf32>
    %85 = vector.extract_strided_slice %81 {offsets = [0, 0], sizes = [2, 32], strides = [1, 1]} : vector<2x128xf32> to vector<2x32xf32>
    %86 = vector.extract_strided_slice %82 {offsets = [0, 64], sizes = [2, 32], strides = [1, 1]} : vector<2x128xf32> to vector<2x32xf32>
    %87 = arith.mulf %85, %86 : vector<2x32xf32>
    %88 = arith.addf %84, %87 : vector<2x32xf32>
    %89 = vector.extract_strided_slice %81 {offsets = [0, 96], sizes = [2, 32], strides = [1, 1]} : vector<2x128xf32> to vector<2x32xf32>
    %90 = math.tanh %88 : vector<2x32xf32>
    %91 = arith.mulf %89, %90 : vector<2x32xf32>
    %92 = vector.extract_strided_slice %11 {offsets = [8, 0], sizes = [2, 128], strides = [1, 1]} : vector<16x128xf32> to vector<2x128xf32>
    %cst_25 = arith.constant dense<0.000000e+00> : vector<2x128xf32>
    %93 = tpu.matmul %91, %0, %cst_25 {dimension_numbers = #tpu.dot_dimension_numbers<[1], [0], [0], [1], [0, 0, 1, 1], [], []>} : vector<2x32xf32>, vector<32x128xf32>, vector<2x128xf32> -> vector<2x128xf32>
    %94 = arith.addf %92, %93 : vector<2x128xf32>
    %95 = arith.addf %94, %4 : vector<2x128xf32>
    %96 = arith.negf %95 : vector<2x128xf32>
    %97 = math.exp %96 : vector<2x128xf32>
    %cst_26 = arith.constant 1.000000e+00 : f32
    %98 = vector.broadcast %cst_26 : f32 to vector<2x128xf32>
    %99 = arith.addf %98, %97 : vector<2x128xf32>
    %100 = arith.divf %98, %99 : vector<2x128xf32>
    %101 = math.tanh %95 : vector<2x128xf32>
    %102 = vector.extract_strided_slice %100 {offsets = [0, 32], sizes = [2, 32], strides = [1, 1]} : vector<2x128xf32> to vector<2x32xf32>
    %103 = arith.mulf %102, %88 : vector<2x32xf32>
    %104 = vector.extract_strided_slice %100 {offsets = [0, 0], sizes = [2, 32], strides = [1, 1]} : vector<2x128xf32> to vector<2x32xf32>
    %105 = vector.extract_strided_slice %101 {offsets = [0, 64], sizes = [2, 32], strides = [1, 1]} : vector<2x128xf32> to vector<2x32xf32>
    %106 = arith.mulf %104, %105 : vector<2x32xf32>
    %107 = arith.addf %103, %106 : vector<2x32xf32>
    %108 = vector.extract_strided_slice %100 {offsets = [0, 96], sizes = [2, 32], strides = [1, 1]} : vector<2x128xf32> to vector<2x32xf32>
    %109 = math.tanh %107 : vector<2x32xf32>
    %110 = arith.mulf %108, %109 : vector<2x32xf32>
    %111 = vector.extract_strided_slice %11 {offsets = [10, 0], sizes = [2, 128], strides = [1, 1]} : vector<16x128xf32> to vector<2x128xf32>
    %cst_27 = arith.constant dense<0.000000e+00> : vector<2x128xf32>
    %112 = tpu.matmul %110, %0, %cst_27 {dimension_numbers = #tpu.dot_dimension_numbers<[1], [0], [0], [1], [0, 0, 1, 1], [], []>} : vector<2x32xf32>, vector<32x128xf32>, vector<2x128xf32> -> vector<2x128xf32>
    %113 = arith.addf %111, %112 : vector<2x128xf32>
    %114 = arith.addf %113, %4 : vector<2x128xf32>
    %115 = arith.negf %114 : vector<2x128xf32>
    %116 = math.exp %115 : vector<2x128xf32>
    %cst_28 = arith.constant 1.000000e+00 : f32
    %117 = vector.broadcast %cst_28 : f32 to vector<2x128xf32>
    %118 = arith.addf %117, %116 : vector<2x128xf32>
    %119 = arith.divf %117, %118 : vector<2x128xf32>
    %120 = math.tanh %114 : vector<2x128xf32>
    %121 = vector.extract_strided_slice %119 {offsets = [0, 32], sizes = [2, 32], strides = [1, 1]} : vector<2x128xf32> to vector<2x32xf32>
    %122 = arith.mulf %121, %107 : vector<2x32xf32>
    %123 = vector.extract_strided_slice %119 {offsets = [0, 0], sizes = [2, 32], strides = [1, 1]} : vector<2x128xf32> to vector<2x32xf32>
    %124 = vector.extract_strided_slice %120 {offsets = [0, 64], sizes = [2, 32], strides = [1, 1]} : vector<2x128xf32> to vector<2x32xf32>
    %125 = arith.mulf %123, %124 : vector<2x32xf32>
    %126 = arith.addf %122, %125 : vector<2x32xf32>
    %127 = vector.extract_strided_slice %119 {offsets = [0, 96], sizes = [2, 32], strides = [1, 1]} : vector<2x128xf32> to vector<2x32xf32>
    %128 = math.tanh %126 : vector<2x32xf32>
    %129 = arith.mulf %127, %128 : vector<2x32xf32>
    %130 = vector.extract_strided_slice %11 {offsets = [12, 0], sizes = [2, 128], strides = [1, 1]} : vector<16x128xf32> to vector<2x128xf32>
    %cst_29 = arith.constant dense<0.000000e+00> : vector<2x128xf32>
    %131 = tpu.matmul %129, %0, %cst_29 {dimension_numbers = #tpu.dot_dimension_numbers<[1], [0], [0], [1], [0, 0, 1, 1], [], []>} : vector<2x32xf32>, vector<32x128xf32>, vector<2x128xf32> -> vector<2x128xf32>
    %132 = arith.addf %130, %131 : vector<2x128xf32>
    %133 = arith.addf %132, %4 : vector<2x128xf32>
    %134 = arith.negf %133 : vector<2x128xf32>
    %135 = math.exp %134 : vector<2x128xf32>
    %cst_30 = arith.constant 1.000000e+00 : f32
    %136 = vector.broadcast %cst_30 : f32 to vector<2x128xf32>
    %137 = arith.addf %136, %135 : vector<2x128xf32>
    %138 = arith.divf %136, %137 : vector<2x128xf32>
    %139 = math.tanh %133 : vector<2x128xf32>
    %140 = vector.extract_strided_slice %138 {offsets = [0, 32], sizes = [2, 32], strides = [1, 1]} : vector<2x128xf32> to vector<2x32xf32>
    %141 = arith.mulf %140, %126 : vector<2x32xf32>
    %142 = vector.extract_strided_slice %138 {offsets = [0, 0], sizes = [2, 32], strides = [1, 1]} : vector<2x128xf32> to vector<2x32xf32>
    %143 = vector.extract_strided_slice %139 {offsets = [0, 64], sizes = [2, 32], strides = [1, 1]} : vector<2x128xf32> to vector<2x32xf32>
    %144 = arith.mulf %142, %143 : vector<2x32xf32>
    %145 = arith.addf %141, %144 : vector<2x32xf32>
    %146 = vector.extract_strided_slice %138 {offsets = [0, 96], sizes = [2, 32], strides = [1, 1]} : vector<2x128xf32> to vector<2x32xf32>
    %147 = math.tanh %145 : vector<2x32xf32>
    %148 = arith.mulf %146, %147 : vector<2x32xf32>
    %149 = vector.extract_strided_slice %11 {offsets = [14, 0], sizes = [2, 128], strides = [1, 1]} : vector<16x128xf32> to vector<2x128xf32>
    %cst_31 = arith.constant dense<0.000000e+00> : vector<2x128xf32>
    %150 = tpu.matmul %148, %0, %cst_31 {dimension_numbers = #tpu.dot_dimension_numbers<[1], [0], [0], [1], [0, 0, 1, 1], [], []>} : vector<2x32xf32>, vector<32x128xf32>, vector<2x128xf32> -> vector<2x128xf32>
    %151 = arith.addf %149, %150 : vector<2x128xf32>
    %152 = arith.addf %151, %4 : vector<2x128xf32>
    %153 = arith.negf %152 : vector<2x128xf32>
    %154 = math.exp %153 : vector<2x128xf32>
    %cst_32 = arith.constant 1.000000e+00 : f32
    %155 = vector.broadcast %cst_32 : f32 to vector<2x128xf32>
    %156 = arith.addf %155, %154 : vector<2x128xf32>
    %157 = arith.divf %155, %156 : vector<2x128xf32>
    %158 = math.tanh %152 : vector<2x128xf32>
    %159 = vector.extract_strided_slice %157 {offsets = [0, 32], sizes = [2, 32], strides = [1, 1]} : vector<2x128xf32> to vector<2x32xf32>
    %160 = arith.mulf %159, %145 : vector<2x32xf32>
    %161 = vector.extract_strided_slice %157 {offsets = [0, 0], sizes = [2, 32], strides = [1, 1]} : vector<2x128xf32> to vector<2x32xf32>
    %162 = vector.extract_strided_slice %158 {offsets = [0, 64], sizes = [2, 32], strides = [1, 1]} : vector<2x128xf32> to vector<2x32xf32>
    %163 = arith.mulf %161, %162 : vector<2x32xf32>
    %164 = arith.addf %160, %163 : vector<2x32xf32>
    %165 = vector.extract_strided_slice %157 {offsets = [0, 96], sizes = [2, 32], strides = [1, 1]} : vector<2x128xf32> to vector<2x32xf32>
    %166 = math.tanh %164 : vector<2x32xf32>
    %167 = arith.mulf %165, %166 : vector<2x32xf32>
    %168 = vector.extract_strided_slice %13 {offsets = [0, 0], sizes = [2, 128], strides = [1, 1]} : vector<16x128xf32> to vector<2x128xf32>
    %cst_33 = arith.constant dense<0.000000e+00> : vector<2x128xf32>
    %169 = tpu.matmul %167, %1, %cst_33 {dimension_numbers = #tpu.dot_dimension_numbers<[1], [0], [0], [1], [0, 0, 1, 1], [], []>} : vector<2x32xf32>, vector<32x128xf32>, vector<2x128xf32> -> vector<2x128xf32>
    %170 = arith.addf %168, %169 : vector<2x128xf32>
    %171 = arith.addf %170, %7 : vector<2x128xf32>
    %172 = arith.negf %171 : vector<2x128xf32>
    %173 = math.exp %172 : vector<2x128xf32>
    %cst_34 = arith.constant 1.000000e+00 : f32
    %174 = vector.broadcast %cst_34 : f32 to vector<2x128xf32>
    %175 = arith.addf %174, %173 : vector<2x128xf32>
    %176 = arith.divf %174, %175 : vector<2x128xf32>
    %177 = math.tanh %171 : vector<2x128xf32>
    %178 = vector.extract_strided_slice %176 {offsets = [0, 32], sizes = [2, 32], strides = [1, 1]} : vector<2x128xf32> to vector<2x32xf32>
    %179 = arith.mulf %178, %164 : vector<2x32xf32>
    %180 = vector.extract_strided_slice %176 {offsets = [0, 0], sizes = [2, 32], strides = [1, 1]} : vector<2x128xf32> to vector<2x32xf32>
    %181 = vector.extract_strided_slice %177 {offsets = [0, 64], sizes = [2, 32], strides = [1, 1]} : vector<2x128xf32> to vector<2x32xf32>
    %182 = arith.mulf %180, %181 : vector<2x32xf32>
    %183 = arith.addf %179, %182 : vector<2x32xf32>
    %184 = vector.extract_strided_slice %176 {offsets = [0, 96], sizes = [2, 32], strides = [1, 1]} : vector<2x128xf32> to vector<2x32xf32>
    %185 = math.tanh %183 : vector<2x32xf32>
    %186 = arith.mulf %184, %185 : vector<2x32xf32>
    %187 = vector.extract_strided_slice %13 {offsets = [2, 0], sizes = [2, 128], strides = [1, 1]} : vector<16x128xf32> to vector<2x128xf32>
    %cst_35 = arith.constant dense<0.000000e+00> : vector<2x128xf32>
    %188 = tpu.matmul %186, %1, %cst_35 {dimension_numbers = #tpu.dot_dimension_numbers<[1], [0], [0], [1], [0, 0, 1, 1], [], []>} : vector<2x32xf32>, vector<32x128xf32>, vector<2x128xf32> -> vector<2x128xf32>
    %189 = arith.addf %187, %188 : vector<2x128xf32>
    %190 = arith.addf %189, %7 : vector<2x128xf32>
    %191 = arith.negf %190 : vector<2x128xf32>
    %192 = math.exp %191 : vector<2x128xf32>
    %cst_36 = arith.constant 1.000000e+00 : f32
    %193 = vector.broadcast %cst_36 : f32 to vector<2x128xf32>
    %194 = arith.addf %193, %192 : vector<2x128xf32>
    %195 = arith.divf %193, %194 : vector<2x128xf32>
    %196 = math.tanh %190 : vector<2x128xf32>
    %197 = vector.extract_strided_slice %195 {offsets = [0, 32], sizes = [2, 32], strides = [1, 1]} : vector<2x128xf32> to vector<2x32xf32>
    %198 = arith.mulf %197, %164 : vector<2x32xf32>
    %199 = vector.extract_strided_slice %195 {offsets = [0, 0], sizes = [2, 32], strides = [1, 1]} : vector<2x128xf32> to vector<2x32xf32>
    %200 = vector.extract_strided_slice %196 {offsets = [0, 64], sizes = [2, 32], strides = [1, 1]} : vector<2x128xf32> to vector<2x32xf32>
    %201 = arith.mulf %199, %200 : vector<2x32xf32>
    %202 = arith.addf %198, %201 : vector<2x32xf32>
    %203 = vector.extract_strided_slice %195 {offsets = [0, 96], sizes = [2, 32], strides = [1, 1]} : vector<2x128xf32> to vector<2x32xf32>
    %204 = math.tanh %202 : vector<2x32xf32>
    %205 = arith.mulf %203, %204 : vector<2x32xf32>
    %206 = vector.extract_strided_slice %13 {offsets = [4, 0], sizes = [2, 128], strides = [1, 1]} : vector<16x128xf32> to vector<2x128xf32>
    %cst_37 = arith.constant dense<0.000000e+00> : vector<2x128xf32>
    %207 = tpu.matmul %205, %1, %cst_37 {dimension_numbers = #tpu.dot_dimension_numbers<[1], [0], [0], [1], [0, 0, 1, 1], [], []>} : vector<2x32xf32>, vector<32x128xf32>, vector<2x128xf32> -> vector<2x128xf32>
    %208 = arith.addf %206, %207 : vector<2x128xf32>
    %209 = arith.addf %208, %7 : vector<2x128xf32>
    %210 = arith.negf %209 : vector<2x128xf32>
    %211 = math.exp %210 : vector<2x128xf32>
    %cst_38 = arith.constant 1.000000e+00 : f32
    %212 = vector.broadcast %cst_38 : f32 to vector<2x128xf32>
    %213 = arith.addf %212, %211 : vector<2x128xf32>
    %214 = arith.divf %212, %213 : vector<2x128xf32>
    %215 = math.tanh %209 : vector<2x128xf32>
    %216 = vector.extract_strided_slice %214 {offsets = [0, 32], sizes = [2, 32], strides = [1, 1]} : vector<2x128xf32> to vector<2x32xf32>
    %217 = arith.mulf %216, %164 : vector<2x32xf32>
    %218 = vector.extract_strided_slice %214 {offsets = [0, 0], sizes = [2, 32], strides = [1, 1]} : vector<2x128xf32> to vector<2x32xf32>
    %219 = vector.extract_strided_slice %215 {offsets = [0, 64], sizes = [2, 32], strides = [1, 1]} : vector<2x128xf32> to vector<2x32xf32>
    %220 = arith.mulf %218, %219 : vector<2x32xf32>
    %221 = arith.addf %217, %220 : vector<2x32xf32>
    %222 = vector.extract_strided_slice %214 {offsets = [0, 96], sizes = [2, 32], strides = [1, 1]} : vector<2x128xf32> to vector<2x32xf32>
    %223 = math.tanh %221 : vector<2x32xf32>
    %224 = arith.mulf %222, %223 : vector<2x32xf32>
    %225 = vector.extract_strided_slice %13 {offsets = [6, 0], sizes = [2, 128], strides = [1, 1]} : vector<16x128xf32> to vector<2x128xf32>
    %cst_39 = arith.constant dense<0.000000e+00> : vector<2x128xf32>
    %226 = tpu.matmul %224, %1, %cst_39 {dimension_numbers = #tpu.dot_dimension_numbers<[1], [0], [0], [1], [0, 0, 1, 1], [], []>} : vector<2x32xf32>, vector<32x128xf32>, vector<2x128xf32> -> vector<2x128xf32>
    %227 = arith.addf %225, %226 : vector<2x128xf32>
    %228 = arith.addf %227, %7 : vector<2x128xf32>
    %229 = arith.negf %228 : vector<2x128xf32>
    %230 = math.exp %229 : vector<2x128xf32>
    %cst_40 = arith.constant 1.000000e+00 : f32
    %231 = vector.broadcast %cst_40 : f32 to vector<2x128xf32>
    %232 = arith.addf %231, %230 : vector<2x128xf32>
    %233 = arith.divf %231, %232 : vector<2x128xf32>
    %234 = math.tanh %228 : vector<2x128xf32>
    %235 = vector.extract_strided_slice %233 {offsets = [0, 32], sizes = [2, 32], strides = [1, 1]} : vector<2x128xf32> to vector<2x32xf32>
    %236 = arith.mulf %235, %164 : vector<2x32xf32>
    %237 = vector.extract_strided_slice %233 {offsets = [0, 0], sizes = [2, 32], strides = [1, 1]} : vector<2x128xf32> to vector<2x32xf32>
    %238 = vector.extract_strided_slice %234 {offsets = [0, 64], sizes = [2, 32], strides = [1, 1]} : vector<2x128xf32> to vector<2x32xf32>
    %239 = arith.mulf %237, %238 : vector<2x32xf32>
    %240 = arith.addf %236, %239 : vector<2x32xf32>
    %241 = vector.extract_strided_slice %233 {offsets = [0, 96], sizes = [2, 32], strides = [1, 1]} : vector<2x128xf32> to vector<2x32xf32>
    %242 = math.tanh %240 : vector<2x32xf32>
    %243 = arith.mulf %241, %242 : vector<2x32xf32>
    %244 = vector.extract_strided_slice %13 {offsets = [8, 0], sizes = [2, 128], strides = [1, 1]} : vector<16x128xf32> to vector<2x128xf32>
    %cst_41 = arith.constant dense<0.000000e+00> : vector<2x128xf32>
    %245 = tpu.matmul %243, %1, %cst_41 {dimension_numbers = #tpu.dot_dimension_numbers<[1], [0], [0], [1], [0, 0, 1, 1], [], []>} : vector<2x32xf32>, vector<32x128xf32>, vector<2x128xf32> -> vector<2x128xf32>
    %246 = arith.addf %244, %245 : vector<2x128xf32>
    %247 = arith.addf %246, %7 : vector<2x128xf32>
    %248 = arith.negf %247 : vector<2x128xf32>
    %249 = math.exp %248 : vector<2x128xf32>
    %cst_42 = arith.constant 1.000000e+00 : f32
    %250 = vector.broadcast %cst_42 : f32 to vector<2x128xf32>
    %251 = arith.addf %250, %249 : vector<2x128xf32>
    %252 = arith.divf %250, %251 : vector<2x128xf32>
    %253 = math.tanh %247 : vector<2x128xf32>
    %254 = vector.extract_strided_slice %252 {offsets = [0, 32], sizes = [2, 32], strides = [1, 1]} : vector<2x128xf32> to vector<2x32xf32>
    %255 = arith.mulf %254, %164 : vector<2x32xf32>
    %256 = vector.extract_strided_slice %252 {offsets = [0, 0], sizes = [2, 32], strides = [1, 1]} : vector<2x128xf32> to vector<2x32xf32>
    %257 = vector.extract_strided_slice %253 {offsets = [0, 64], sizes = [2, 32], strides = [1, 1]} : vector<2x128xf32> to vector<2x32xf32>
    %258 = arith.mulf %256, %257 : vector<2x32xf32>
    %259 = arith.addf %255, %258 : vector<2x32xf32>
    %260 = vector.extract_strided_slice %252 {offsets = [0, 96], sizes = [2, 32], strides = [1, 1]} : vector<2x128xf32> to vector<2x32xf32>
    %261 = math.tanh %259 : vector<2x32xf32>
    %262 = arith.mulf %260, %261 : vector<2x32xf32>
    %263 = vector.extract_strided_slice %13 {offsets = [10, 0], sizes = [2, 128], strides = [1, 1]} : vector<16x128xf32> to vector<2x128xf32>
    %cst_43 = arith.constant dense<0.000000e+00> : vector<2x128xf32>
    %264 = tpu.matmul %262, %1, %cst_43 {dimension_numbers = #tpu.dot_dimension_numbers<[1], [0], [0], [1], [0, 0, 1, 1], [], []>} : vector<2x32xf32>, vector<32x128xf32>, vector<2x128xf32> -> vector<2x128xf32>
    %265 = arith.addf %263, %264 : vector<2x128xf32>
    %266 = arith.addf %265, %7 : vector<2x128xf32>
    %267 = arith.negf %266 : vector<2x128xf32>
    %268 = math.exp %267 : vector<2x128xf32>
    %cst_44 = arith.constant 1.000000e+00 : f32
    %269 = vector.broadcast %cst_44 : f32 to vector<2x128xf32>
    %270 = arith.addf %269, %268 : vector<2x128xf32>
    %271 = arith.divf %269, %270 : vector<2x128xf32>
    %272 = math.tanh %266 : vector<2x128xf32>
    %273 = vector.extract_strided_slice %271 {offsets = [0, 32], sizes = [2, 32], strides = [1, 1]} : vector<2x128xf32> to vector<2x32xf32>
    %274 = arith.mulf %273, %164 : vector<2x32xf32>
    %275 = vector.extract_strided_slice %271 {offsets = [0, 0], sizes = [2, 32], strides = [1, 1]} : vector<2x128xf32> to vector<2x32xf32>
    %276 = vector.extract_strided_slice %272 {offsets = [0, 64], sizes = [2, 32], strides = [1, 1]} : vector<2x128xf32> to vector<2x32xf32>
    %277 = arith.mulf %275, %276 : vector<2x32xf32>
    %278 = arith.addf %274, %277 : vector<2x32xf32>
    %279 = vector.extract_strided_slice %271 {offsets = [0, 96], sizes = [2, 32], strides = [1, 1]} : vector<2x128xf32> to vector<2x32xf32>
    %280 = math.tanh %278 : vector<2x32xf32>
    %281 = arith.mulf %279, %280 : vector<2x32xf32>
    %282 = vector.extract_strided_slice %13 {offsets = [12, 0], sizes = [2, 128], strides = [1, 1]} : vector<16x128xf32> to vector<2x128xf32>
    %cst_45 = arith.constant dense<0.000000e+00> : vector<2x128xf32>
    %283 = tpu.matmul %281, %1, %cst_45 {dimension_numbers = #tpu.dot_dimension_numbers<[1], [0], [0], [1], [0, 0, 1, 1], [], []>} : vector<2x32xf32>, vector<32x128xf32>, vector<2x128xf32> -> vector<2x128xf32>
    %284 = arith.addf %282, %283 : vector<2x128xf32>
    %285 = arith.addf %284, %7 : vector<2x128xf32>
    %286 = arith.negf %285 : vector<2x128xf32>
    %287 = math.exp %286 : vector<2x128xf32>
    %cst_46 = arith.constant 1.000000e+00 : f32
    %288 = vector.broadcast %cst_46 : f32 to vector<2x128xf32>
    %289 = arith.addf %288, %287 : vector<2x128xf32>
    %290 = arith.divf %288, %289 : vector<2x128xf32>
    %291 = math.tanh %285 : vector<2x128xf32>
    %292 = vector.extract_strided_slice %290 {offsets = [0, 32], sizes = [2, 32], strides = [1, 1]} : vector<2x128xf32> to vector<2x32xf32>
    %293 = arith.mulf %292, %164 : vector<2x32xf32>
    %294 = vector.extract_strided_slice %290 {offsets = [0, 0], sizes = [2, 32], strides = [1, 1]} : vector<2x128xf32> to vector<2x32xf32>
    %295 = vector.extract_strided_slice %291 {offsets = [0, 64], sizes = [2, 32], strides = [1, 1]} : vector<2x128xf32> to vector<2x32xf32>
    %296 = arith.mulf %294, %295 : vector<2x32xf32>
    %297 = arith.addf %293, %296 : vector<2x32xf32>
    %298 = vector.extract_strided_slice %290 {offsets = [0, 96], sizes = [2, 32], strides = [1, 1]} : vector<2x128xf32> to vector<2x32xf32>
    %299 = math.tanh %297 : vector<2x32xf32>
    %300 = arith.mulf %298, %299 : vector<2x32xf32>
    %301 = vector.extract_strided_slice %13 {offsets = [14, 0], sizes = [2, 128], strides = [1, 1]} : vector<16x128xf32> to vector<2x128xf32>
    %cst_47 = arith.constant dense<0.000000e+00> : vector<2x128xf32>
    %302 = tpu.matmul %300, %1, %cst_47 {dimension_numbers = #tpu.dot_dimension_numbers<[1], [0], [0], [1], [0, 0, 1, 1], [], []>} : vector<2x32xf32>, vector<32x128xf32>, vector<2x128xf32> -> vector<2x128xf32>
    %303 = arith.addf %301, %302 : vector<2x128xf32>
    %304 = arith.addf %303, %7 : vector<2x128xf32>
    %305 = arith.negf %304 : vector<2x128xf32>
    %306 = math.exp %305 : vector<2x128xf32>
    %cst_48 = arith.constant 1.000000e+00 : f32
    %307 = vector.broadcast %cst_48 : f32 to vector<2x128xf32>
    %308 = arith.addf %307, %306 : vector<2x128xf32>
    %309 = arith.divf %307, %308 : vector<2x128xf32>
    %310 = math.tanh %304 : vector<2x128xf32>
    %311 = vector.extract_strided_slice %309 {offsets = [0, 32], sizes = [2, 32], strides = [1, 1]} : vector<2x128xf32> to vector<2x32xf32>
    %312 = arith.mulf %311, %164 : vector<2x32xf32>
    %313 = vector.extract_strided_slice %309 {offsets = [0, 0], sizes = [2, 32], strides = [1, 1]} : vector<2x128xf32> to vector<2x32xf32>
    %314 = vector.extract_strided_slice %310 {offsets = [0, 64], sizes = [2, 32], strides = [1, 1]} : vector<2x128xf32> to vector<2x32xf32>
    %315 = arith.mulf %313, %314 : vector<2x32xf32>
    %316 = arith.addf %312, %315 : vector<2x32xf32>
    %317 = vector.extract_strided_slice %309 {offsets = [0, 96], sizes = [2, 32], strides = [1, 1]} : vector<2x128xf32> to vector<2x32xf32>
    %318 = math.tanh %316 : vector<2x32xf32>
    %319 = arith.mulf %317, %318 : vector<2x32xf32>
    %320 = tpu.concatenate %34, %53, %72, %91, %110, %129, %148, %167 in 0 : vector<2x32xf32>, vector<2x32xf32>, vector<2x32xf32>, vector<2x32xf32>, vector<2x32xf32>, vector<2x32xf32>, vector<2x32xf32>, vector<2x32xf32> -> vector<16x32xf32>
    %321 = tpu.concatenate %186, %205, %224, %243, %262, %281, %300, %319 in 0 : vector<2x32xf32>, vector<2x32xf32>, vector<2x32xf32>, vector<2x32xf32>, vector<2x32xf32>, vector<2x32xf32>, vector<2x32xf32>, vector<2x32xf32> -> vector<16x32xf32>
    %c0_49 = arith.constant 0 : index
    %c0_50 = arith.constant 0 : index
    %322 = vector.load %arg8[%c0_49, %c0_50] : memref<32x16xf32, #tpu.memory_space<vmem>>, vector<32x16xf32>
    %cst_51 = arith.constant dense<0.000000e+00> : vector<16x16xf32>
    %323 = tpu.matmul %320, %322, %cst_51 {dimension_numbers = #tpu.dot_dimension_numbers<[1], [0], [0], [1], [0, 0, 1, 1], [], []>} : vector<16x32xf32>, vector<32x16xf32>, vector<16x16xf32> -> vector<16x16xf32>
    %c0_52 = arith.constant 0 : index
    %c0_53 = arith.constant 0 : index
    %324 = vector.load %arg9[%c0_52, %c0_53] : memref<32x128xf32, #tpu.memory_space<vmem>>, vector<32x128xf32>
    %cst_54 = arith.constant dense<0.000000e+00> : vector<16x128xf32>
    %325 = tpu.matmul %321, %324, %cst_54 {dimension_numbers = #tpu.dot_dimension_numbers<[1], [0], [0], [1], [0, 0, 1, 1], [], []>} : vector<16x32xf32>, vector<32x128xf32>, vector<16x128xf32> -> vector<16x128xf32>
    %326 = vector.extract_strided_slice %323 {offsets = [0, 0], sizes = [2, 16], strides = [1, 1]} : vector<16x16xf32> to vector<2x16xf32>
    %327 = vector.extract_strided_slice %323 {offsets = [2, 0], sizes = [2, 16], strides = [1, 1]} : vector<16x16xf32> to vector<2x16xf32>
    %328 = vector.extract_strided_slice %323 {offsets = [4, 0], sizes = [2, 16], strides = [1, 1]} : vector<16x16xf32> to vector<2x16xf32>
    %329 = vector.extract_strided_slice %323 {offsets = [6, 0], sizes = [2, 16], strides = [1, 1]} : vector<16x16xf32> to vector<2x16xf32>
    %330 = vector.extract_strided_slice %323 {offsets = [8, 0], sizes = [2, 16], strides = [1, 1]} : vector<16x16xf32> to vector<2x16xf32>
    %331 = vector.extract_strided_slice %323 {offsets = [10, 0], sizes = [2, 16], strides = [1, 1]} : vector<16x16xf32> to vector<2x16xf32>
    %332 = vector.extract_strided_slice %323 {offsets = [12, 0], sizes = [2, 16], strides = [1, 1]} : vector<16x16xf32> to vector<2x16xf32>
    %333 = vector.extract_strided_slice %323 {offsets = [14, 0], sizes = [2, 16], strides = [1, 1]} : vector<16x16xf32> to vector<2x16xf32>
    %334 = tpu.concatenate %326, %327, %328, %329, %330, %331, %332, %333 in 1 : vector<2x16xf32>, vector<2x16xf32>, vector<2x16xf32>, vector<2x16xf32>, vector<2x16xf32>, vector<2x16xf32>, vector<2x16xf32>, vector<2x16xf32> -> vector<2x128xf32>
    %335 = tpu.concatenate %334, %334, %334, %334, %334, %334, %334, %334 in 0 : vector<2x128xf32>, vector<2x128xf32>, vector<2x128xf32>, vector<2x128xf32>, vector<2x128xf32>, vector<2x128xf32>, vector<2x128xf32>, vector<2x128xf32> -> vector<16x128xf32>
    %336 = arith.addf %325, %335 : vector<16x128xf32>
    %337 = math.tanh %336 : vector<16x128xf32>
    %c0_55 = arith.constant 0 : index
    %c0_56 = arith.constant 0 : index
    %338 = vector.load %arg10[%c0_55, %c0_56] : memref<128x8xf32, #tpu.memory_space<vmem>>, vector<128x8xf32>
    %cst_57 = arith.constant dense<0.000000e+00> : vector<16x8xf32>
    %339 = tpu.matmul %337, %338, %cst_57 {dimension_numbers = #tpu.dot_dimension_numbers<[1], [0], [0], [1], [0, 0, 1, 1], [], []>} : vector<16x128xf32>, vector<128x8xf32>, vector<16x8xf32> -> vector<16x8xf32>
    %cst_58 = arith.constant dense<0xFF800000> : vector<16xf32>
    %340 = vector.multi_reduction <maximumf>, %339, %cst_58 [1] : vector<16x8xf32> to vector<16xf32>
    %341 = vector.shape_cast %340 : vector<16xf32> to vector<16x1xf32>
    %342 = vector.broadcast %341 : vector<16x1xf32> to vector<16x8xf32>
    %343 = arith.subf %339, %342 : vector<16x8xf32>
    %344 = math.exp %343 : vector<16x8xf32>
    %cst_59 = arith.constant dense<0.000000e+00> : vector<16xf32>
    %345 = vector.multi_reduction <add>, %344, %cst_59 [1] : vector<16x8xf32> to vector<16xf32>
    %346 = vector.shape_cast %345 : vector<16xf32> to vector<16x1xf32>
    %347 = math.log %346 : vector<16x1xf32>
    %348 = vector.broadcast %347 : vector<16x1xf32> to vector<16x8xf32>
    %349 = arith.subf %343, %348 : vector<16x8xf32>
    %c0_60 = arith.constant 0 : index
    %c0_61 = arith.constant 0 : index
    %c0_62 = arith.constant 0 : index
    %350 = vector.load %arg11[%c0_60, %c0_61, %c0_62] : memref<1x16x8xf32, #tpu.memory_space<vmem>>, vector<1x16x8xf32>
    %351 = vector.shape_cast %350 : vector<1x16x8xf32> to vector<16x8xf32>
    %352 = vector.shape_cast %349 : vector<16x8xf32> to vector<1x16x8xf32>
    tpu.vector_store %arg11[%c0_60, %c0_61, %c0_62], %352 {strides = array<i32>} : memref<1x16x8xf32, #tpu.memory_space<vmem>>, vector<1x16x8xf32>,
    return
  }
  func.func @transform_0(%arg0: i32) -> (i32, i32, i32) {
    %c0_i32 = arith.constant 0 : i32
    %c0_i32_0 = arith.constant 0 : i32
    %c0_i32_1 = arith.constant 0 : i32
    return %arg0, %c0_i32, %c0_i32_0 : i32, i32, i32
  }
  func.func @transform_1(%arg0: i32) -> (i32, i32) {
    %c0_i32 = arith.constant 0 : i32
    %c0_i32_0 = arith.constant 0 : i32
    %c0_i32_1 = arith.constant 0 : i32
    return %c0_i32, %c0_i32_0 : i32, i32
  }
  func.func @transform_2(%arg0: i32) -> (i32, i32) {
    %c0_i32 = arith.constant 0 : i32
    %c0_i32_0 = arith.constant 0 : i32
    %c0_i32_1 = arith.constant 0 : i32
    return %c0_i32, %c0_i32_0 : i32, i32
  }
  func.func @transform_3(%arg0: i32) -> (i32, i32) {
    %c0_i32 = arith.constant 0 : i32
    %c0_i32_0 = arith.constant 0 : i32
    %c0_i32_1 = arith.constant 0 : i32
    return %c0_i32, %c0_i32_0 : i32, i32
  }
  func.func @transform_4(%arg0: i32) -> (i32, i32) {
    %c0_i32 = arith.constant 0 : i32
    %c0_i32_0 = arith.constant 0 : i32
    %c0_i32_1 = arith.constant 0 : i32
    return %c0_i32, %c0_i32_0 : i32, i32
  }
  func.func @transform_5(%arg0: i32) -> (i32, i32) {
    %c0_i32 = arith.constant 0 : i32
    %c0_i32_0 = arith.constant 0 : i32
    %c0_i32_1 = arith.constant 0 : i32
    return %c0_i32, %c0_i32_0 : i32, i32
  }
  func.func @transform_6(%arg0: i32) -> (i32, i32) {
    %c0_i32 = arith.constant 0 : i32
    %c0_i32_0 = arith.constant 0 : i32
    %c0_i32_1 = arith.constant 0 : i32
    return %c0_i32, %c0_i32_0 : i32, i32
  }
  func.func @transform_7(%arg0: i32) -> (i32, i32) {
    %c0_i32 = arith.constant 0 : i32
    %c0_i32_0 = arith.constant 0 : i32
    %c0_i32_1 = arith.constant 0 : i32
    return %c0_i32, %c0_i32_0 : i32, i32
  }
  func.func @transform_8(%arg0: i32) -> (i32, i32) {
    %c0_i32 = arith.constant 0 : i32
    %c0_i32_0 = arith.constant 0 : i32
    %c0_i32_1 = arith.constant 0 : i32
    return %c0_i32, %c0_i32_0 : i32, i32
  }
  func.func @transform_9(%arg0: i32) -> (i32, i32) {
    %c0_i32 = arith.constant 0 : i32
    %c0_i32_0 = arith.constant 0 : i32
    %c0_i32_1 = arith.constant 0 : i32
    return %c0_i32, %c0_i32_0 : i32, i32
  }
  func.func @transform_10(%arg0: i32) -> (i32, i32, i32) {
    %c0_i32 = arith.constant 0 : i32
    %c0_i32_0 = arith.constant 0 : i32
    %c0_i32_1 = arith.constant 0 : i32
    return %arg0, %c0_i32, %c0_i32_0 : i32, i32, i32
  }
}

</mosaic_0001>

<llo_original>
// kernel: tpu_custom_call.1
$region0: #{tpu_custom_call.1}
  #allocation0 [shape = 'u32[]', space=smem, size = 0x4, offset = 0x4, fixed_abs, tag = 'smem constant byte address 0x4 - core index']
  #allocation1 [shape = 'u32[72,128]{1,0:T(1,128)}', space=vmem, size = 0x9000, scoped, tag = 'internal scratch']
  %s0 = inlined_call_operand.vmem [shape: f32[2,16,8], index: 0, kind: input, shape index: {}]
  %s1 = inlined_call_operand.vmem [shape: f32[8,128], index: 1, kind: input, shape index: {}]
  %s2 = inlined_call_operand.vmem [shape: f32[32,128], index: 2, kind: input, shape index: {}]
  %s3 = inlined_call_operand.vmem [shape: f32[1,128], index: 3, kind: input, shape index: {}]
  %s4 = inlined_call_operand.vmem [shape: f32[8,128], index: 4, kind: input, shape index: {}]
  %s5 = inlined_call_operand.vmem [shape: f32[32,128], index: 5, kind: input, shape index: {}]
  %s6 = inlined_call_operand.vmem [shape: f32[1,128], index: 6, kind: input, shape index: {}]
  %s7 = inlined_call_operand.vmem [shape: f32[32,16], index: 7, kind: input, shape index: {}]
  %s8 = inlined_call_operand.vmem [shape: f32[32,128], index: 8, kind: input, shape index: {}]
  %s9 = inlined_call_operand.vmem [shape: f32[128,8], index: 9, kind: input, shape index: {}]
  %s10 = inlined_call_operand.vmem [shape: f32[2,16,8], index: 10, kind: output, shape index: {}]
  %s11 = sld [smem:[#allocation0]]
  $region73: #{tpu_custom_call.1} parent=0
    _
  %s13 = ssub.s32 1, %s11
  %s14 = scalar_select 0, %s13, %s11
  loop: start=0, step=1, limit=4
  $region2: #{tpu_custom_call.1} parent=0 // loop_pre_header
    _
  $region3: #{tpu_custom_call.1} parent=0 // loop_header
    %s16 = sphi 0, %s20
    %p17 = scmp.ge.s32.totalorder %s16, 4
    %s26 = sphi 0, %s28
    %s29 = sphi 0, %s26
    %s30 = sphi 0, %s29
    %s46 = sphi 0, %s30
    %s50 = sphi 0, %s50
    %s52 = sphi 0, %s50
    %s53 = sphi 0, %s52
    %s67 = sphi 0, %s53
    %s71 = sphi 0, %s71
    %s73 = sphi 0, %s71
    %s74 = sphi 0, %s73
    %s88 = sphi 0, %s74
    %s92 = sphi 0, %s92
    %s94 = sphi 0, %s92
    %s95 = sphi 0, %s94
    %s109 = sphi 0, %s95
    %s113 = sphi 0, %s113
    %s115 = sphi 0, %s113
    %s116 = sphi 0, %s115
    %s130 = sphi 0, %s116
    %s134 = sphi 0, %s134
    %s136 = sphi 0, %s134
    %s137 = sphi 0, %s136
    %s151 = sphi 0, %s137
    %s155 = sphi 0, %s155
    %s157 = sphi 0, %s155
    %s158 = sphi 0, %s157
    %s172 = sphi 0, %s158
    %s176 = sphi 0, %s176
    %s178 = sphi 0, %s176
    %s179 = sphi 0, %s178
    %s193 = sphi 0, %s179
    %s197 = sphi 0, %s197
    %s199 = sphi 0, %s197
    %s200 = sphi 0, %s199
    %s214 = sphi 0, %s200
    %s218 = sphi 0, %s218
    %s220 = sphi 0, %s218
    %s221 = sphi 0, %s220
    %s235 = sphi 0, %s221
    %s241 = sphi 0, %s243
    %s244 = sphi 0, %s241
    %s245 = sphi 0, %s244
    %s261 = sphi 0, %s245
  $region4: #{tpu_custom_call.1} parent=0 // loop_header_branch
    %19 = sbr.rel (%p17) target = $region8
  $region5: #{tpu_custom_call.1} parent=0 // loop_body
    %s21 = ssub.s32 %s16, 1
    %s22 = ssub.s32 %s16, 2
    %s23 = sadd.s32 %s16, 1
    %s24 = ssub.s32 %s16, %s23
    %p25 = scmp.eq.s32.totalorder %s24, 0
    %s27 = sadd.s32 %s26, 1
    %s28 = scalar_select %p25, %s26, %s27
    %p31 = pneg %p25
    %p32 = scmp.eq.s32.totalorder %s16, 1
    %p33 = por %p31, %p32
    %p34 = scmp.ne.s32.totalorder %s26, %s29
    %p35 = scmp.eq.s32.totalorder %s16, 0
    %p36 = por %p34, %p35
    %p37 = scmp.ne.s32.totalorder %s26, %s29
    %p38 = scmp.eq.s32.totalorder %s21, 1
    %p39 = por %p37, %p38
    %p40 = scmp.ne.s32.totalorder %s29, %s30
    %p41 = scmp.eq.s32.totalorder %s21, 0
    %p42 = por %p40, %p41
    %p43 = scmp.ne.s32.totalorder %s29, %s30
    %p44 = scmp.eq.s32.totalorder %s22, 1
    %p45 = por %p43, %p44
    %p47 = scmp.ne.s32.totalorder %s30, %s46
    %p48 = scmp.eq.s32.totalorder %s22, 0
    %p49 = por %p47, %p48
    %s51 = sadd.s32 %s50, 1
    %p54 = scmp.eq.s32.totalorder %s16, 1
    %p55 = scmp.ne.s32.totalorder %s50, %s52
    %p56 = scmp.eq.s32.totalorder %s16, 0
    %p57 = por %p55, %p56
    %p58 = scmp.ne.s32.totalorder %s50, %s52
    %p59 = scmp.eq.s32.totalorder %s21, 1
    %p60 = por %p58, %p59
    %p61 = scmp.ne.s32.totalorder %s52, %s53
    %p62 = scmp.eq.s32.totalorder %s21, 0
    %p63 = por %p61, %p62
    %p64 = scmp.ne.s32.totalorder %s52, %s53
    %p65 = scmp.eq.s32.totalorder %s22, 1
    %p66 = por %p64, %p65
    %p68 = scmp.ne.s32.totalorder %s53, %s67
    %p69 = scmp.eq.s32.totalorder %s22, 0
    %p70 = por %p68, %p69
    %s72 = sadd.s32 %s71, 1
    %p75 = scmp.eq.s32.totalorder %s16, 1
    %p76 = scmp.ne.s32.totalorder %s71, %s73
    %p77 = scmp.eq.s32.totalorder %s16, 0
    %p78 = por %p76, %p77
    %p79 = scmp.ne.s32.totalorder %s71, %s73
    %p80 = scmp.eq.s32.totalorder %s21, 1
    %p81 = por %p79, %p80
    %p82 = scmp.ne.s32.totalorder %s73, %s74
    %p83 = scmp.eq.s32.totalorder %s21, 0
    %p84 = por %p82, %p83
    %p85 = scmp.ne.s32.totalorder %s73, %s74
    %p86 = scmp.eq.s32.totalorder %s22, 1
    %p87 = por %p85, %p86
    %p89 = scmp.ne.s32.totalorder %s74, %s88
    %p90 = scmp.eq.s32.totalorder %s22, 0
    %p91 = por %p89, %p90
    %s93 = sadd.s32 %s92, 1
    %p96 = scmp.eq.s32.totalorder %s16, 1
    %p97 = scmp.ne.s32.totalorder %s92, %s94
    %p98 = scmp.eq.s32.totalorder %s16, 0
    %p99 = por %p97, %p98
    %p100 = scmp.ne.s32.totalorder %s92, %s94
    %p101 = scmp.eq.s32.totalorder %s21, 1
    %p102 = por %p100, %p101
    %p103 = scmp.ne.s32.totalorder %s94, %s95
    %p104 = scmp.eq.s32.totalorder %s21, 0
    %p105 = por %p103, %p104
    %p106 = scmp.ne.s32.totalorder %s94, %s95
    %p107 = scmp.eq.s32.totalorder %s22, 1
    %p108 = por %p106, %p107
    %p110 = scmp.ne.s32.totalorder %s95, %s109
    %p111 = scmp.eq.s32.totalorder %s22, 0
    %p112 = por %p110, %p111
    %s114 = sadd.s32 %s113, 1
    %p117 = scmp.eq.s32.totalorder %s16, 1
    %p118 = scmp.ne.s32.totalorder %s113, %s115
    %p119 = scmp.eq.s32.totalorder %s16, 0
    %p120 = por %p118, %p119
    %p121 = scmp.ne.s32.totalorder %s113, %s115
    %p122 = scmp.eq.s32.totalorder %s21, 1
    %p123 = por %p121, %p122
    %p124 = scmp.ne.s32.totalorder %s115, %s116
    %p125 = scmp.eq.s32.totalorder %s21, 0
    %p126 = por %p124, %p125
    %p127 = scmp.ne.s32.totalorder %s115, %s116
    %p128 = scmp.eq.s32.totalorder %s22, 1
    %p129 = por %p127, %p128
    %p131 = scmp.ne.s32.totalorder %s116, %s130
    %p132 = scmp.eq.s32.totalorder %s22, 0
    %p133 = por %p131, %p132
    %s135 = sadd.s32 %s134, 1
    %p138 = scmp.eq.s32.totalorder %s16, 1
    %p139 = scmp.ne.s32.totalorder %s134, %s136
    %p140 = scmp.eq.s32.totalorder %s16, 0
    %p141 = por %p139, %p140
    %p142 = scmp.ne.s32.totalorder %s134, %s136
    %p143 = scmp.eq.s32.totalorder %s21, 1
    %p144 = por %p142, %p143
    %p145 = scmp.ne.s32.totalorder %s136, %s137
    %p146 = scmp.eq.s32.totalorder %s21, 0
    %p147 = por %p145, %p146
    %p148 = scmp.ne.s32.totalorder %s136, %s137
    %p149 = scmp.eq.s32.totalorder %s22, 1
    %p150 = por %p148, %p149
    %p152 = scmp.ne.s32.totalorder %s137, %s151
    %p153 = scmp.eq.s32.totalorder %s22, 0
    %p154 = por %p152, %p153
    %s156 = sadd.s32 %s155, 1
    %p159 = scmp.eq.s32.totalorder %s16, 1
    %p160 = scmp.ne.s32.totalorder %s155, %s157
    %p161 = scmp.eq.s32.totalorder %s16, 0
    %p162 = por %p160, %p161
    %p163 = scmp.ne.s32.totalorder %s155, %s157
    %p164 = scmp.eq.s32.totalorder %s21, 1
    %p165 = por %p163, %p164
    %p166 = scmp.ne.s32.totalorder %s157, %s158
    %p167 = scmp.eq.s32.totalorder %s21, 0
    %p168 = por %p166, %p167
    %p169 = scmp.ne.s32.totalorder %s157, %s158
    %p170 = scmp.eq.s32.totalorder %s22, 1
    %p171 = por %p169, %p170
    %p173 = scmp.ne.s32.totalorder %s158, %s172
    %p174 = scmp.eq.s32.totalorder %s22, 0
    %p175 = por %p173, %p174
    %s177 = sadd.s32 %s176, 1
    %p180 = scmp.eq.s32.totalorder %s16, 1
    %p181 = scmp.ne.s32.totalorder %s176, %s178
    %p182 = scmp.eq.s32.totalorder %s16, 0
    %p183 = por %p181, %p182
    %p184 = scmp.ne.s32.totalorder %s176, %s178
    %p185 = scmp.eq.s32.totalorder %s21, 1
    %p186 = por %p184, %p185
    %p187 = scmp.ne.s32.totalorder %s178, %s179
    %p188 = scmp.eq.s32.totalorder %s21, 0
    %p189 = por %p187, %p188
    %p190 = scmp.ne.s32.totalorder %s178, %s179
    %p191 = scmp.eq.s32.totalorder %s22, 1
    %p192 = por %p190, %p191
    %p194 = scmp.ne.s32.totalorder %s179, %s193
    %p195 = scmp.eq.s32.totalorder %s22, 0
    %p196 = por %p194, %p195
    %s198 = sadd.s32 %s197, 1
    %p201 = scmp.eq.s32.totalorder %s16, 1
    %p202 = scmp.ne.s32.totalorder %s197, %s199
    %p203 = scmp.eq.s32.totalorder %s16, 0
    %p204 = por %p202, %p203
    %p205 = scmp.ne.s32.totalorder %s197, %s199
    %p206 = scmp.eq.s32.totalorder %s21, 1
    %p207 = por %p205, %p206
    %p208 = scmp.ne.s32.totalorder %s199, %s200
    %p209 = scmp.eq.s32.totalorder %s21, 0
    %p210 = por %p208, %p209
    %p211 = scmp.ne.s32.totalorder %s199, %s200
    %p212 = scmp.eq.s32.totalorder %s22, 1
    %p213 = por %p211, %p212
    %p215 = scmp.ne.s32.totalorder %s200, %s214
    %p216 = scmp.eq.s32.totalorder %s22, 0
    %p217 = por %p215, %p216
    %s219 = sadd.s32 %s218, 1
    %p222 = scmp.eq.s32.totalorder %s16, 1
    %p223 = scmp.ne.s32.totalorder %s218, %s220
    %p224 = scmp.eq.s32.totalorder %s16, 0
    %p225 = por %p223, %p224
    %p226 = scmp.ne.s32.totalorder %s218, %s220
    %p227 = scmp.eq.s32.totalorder %s21, 1
    %p228 = por %p226, %p227
    %p229 = scmp.ne.s32.totalorder %s220, %s221
    %p230 = scmp.eq.s32.totalorder %s21, 0
    %p231 = por %p229, %p230
    %p232 = scmp.ne.s32.totalorder %s220, %s221
    %p233 = scmp.eq.s32.totalorder %s22, 1
    %p234 = por %p232, %p233
    %p236 = scmp.ne.s32.totalorder %s221, %s235
    %p237 = scmp.eq.s32.totalorder %s22, 0
    %p238 = por %p236, %p237
    %s239 = ssub.s32 %s16, %s23
    %p240 = scmp.eq.s32.totalorder %s239, 0
    %s242 = sadd.s32 %s241, 1
    %s243 = scalar_select %p240, %s241, %s242
    %p246 = pneg %p240
    %p247 = scmp.eq.s32.totalorder %s16, 1
    %p248 = por %p246, %p247
    %p249 = scmp.ne.s32.totalorder %s241, %s244
    %p250 = scmp.eq.s32.totalorder %s16, 0
    %p251 = por %p249, %p250
    %p252 = scmp.ne.s32.totalorder %s241, %s244
    %p253 = scmp.eq.s32.totalorder %s21, 1
    %p254 = por %p252, %p253
    %p255 = scmp.ne.s32.totalorder %s244, %s245
    %p256 = scmp.eq.s32.totalorder %s21, 0
    %p257 = por %p255, %p256
    %p258 = scmp.ne.s32.totalorder %s244, %s245
    %p259 = scmp.eq.s32.totalorder %s22, 1
    %p260 = por %p258, %p259
    %p262 = scmp.ne.s32.totalorder %s245, %s261
    %p263 = scmp.eq.s32.totalorder %s22, 0
    %p264 = por %p262, %p263
    %p265 = scmp.le.s32.totalorder 1, %s16
    %p266 = scmp.lt.s32.totalorder %s16, 3
    %p267 = pnand %p265, %p266
    %p268 = pneg %p267
    // Predicated region
    $region9: #{tpu_custom_call.1} parent=5 // pred_check
      _
    $region10: #{tpu_custom_call.1} parent=5 // pred_check_branch
      %270 = sbr.rel (%p267) target = $region12
    $region11: #{tpu_custom_call.1} parent=5 // pred_region
      %s271 = ssub.s32 %s16, 1
      // Predicated region
      $region13: #{tpu_custom_call.1} parent=11 // pred_check
        %p272 = pneg %p63
      $region14: #{tpu_custom_call.1} parent=11 // pred_check_branch
        %274 = sbr.rel (%p272) target = $region16
      $region15: #{tpu_custom_call.1} parent=11 // pred_region
        _
      $region16: #{tpu_custom_call.1} parent=11 // pred_fallthru
        _
      // Predicated region
      $region17: #{tpu_custom_call.1} parent=11 // pred_check
        %p275 = pneg %p84
      $region18: #{tpu_custom_call.1} parent=11 // pred_check_branch
        %277 = sbr.rel (%p275) target = $region20
      $region19: #{tpu_custom_call.1} parent=11 // pred_region
        _
      $region20: #{tpu_custom_call.1} parent=11 // pred_fallthru
        _
      // Predicated region
      $region21: #{tpu_custom_call.1} parent=11 // pred_check
        %p278 = pneg %p105
      $region22: #{tpu_custom_call.1} parent=11 // pred_check_branch
        %280 = sbr.rel (%p278) target = $region24
      $region23: #{tpu_custom_call.1} parent=11 // pred_region
        _
      $region24: #{tpu_custom_call.1} parent=11 // pred_fallthru
        _
      // Predicated region
      $region25: #{tpu_custom_call.1} parent=11 // pred_check
        %p281 = pneg %p126
      $region26: #{tpu_custom_call.1} parent=11 // pred_check_branch
        %283 = sbr.rel (%p281) target = $region28
      $region27: #{tpu_custom_call.1} parent=11 // pred_region
        _
      $region28: #{tpu_custom_call.1} parent=11 // pred_fallthru
        _
      // Predicated region
      $region29: #{tpu_custom_call.1} parent=11 // pred_check
        %p284 = pneg %p147
      $region30: #{tpu_custom_call.1} parent=11 // pred_check_branch
        %286 = sbr.rel (%p284) target = $region32
      $region31: #{tpu_custom_call.1} parent=11 // pred_region
        _
      $region32: #{tpu_custom_call.1} parent=11 // pred_fallthru
        _
      // Predicated region
      $region33: #{tpu_custom_call.1} parent=11 // pred_check
        %p287 = pneg %p168
      $region34: #{tpu_custom_call.1} parent=11 // pred_check_branch
        %289 = sbr.rel (%p287) target = $region36
      $region35: #{tpu_custom_call.1} parent=11 // pred_region
        _
      $region36: #{tpu_custom_call.1} parent=11 // pred_fallthru
        _
      // Predicated region
      $region37: #{tpu_custom_call.1} parent=11 // pred_check
        %p290 = pneg %p189
      $region38: #{tpu_custom_call.1} parent=11 // pred_check_branch
        %292 = sbr.rel (%p290) target = $region40
      $region39: #{tpu_custom_call.1} parent=11 // pred_region
        _
      $region40: #{tpu_custom_call.1} parent=11 // pred_fallthru
        _
      // Predicated region
      $region41: #{tpu_custom_call.1} parent=11 // pred_check
        %p293 = pneg %p210
      $region42: #{tpu_custom_call.1} parent=11 // pred_check_branch
        %295 = sbr.rel (%p293) target = $region44
      $region43: #{tpu_custom_call.1} parent=11 // pred_region
        _
      $region44: #{tpu_custom_call.1} parent=11 // pred_fallthru
        _
      // Predicated region
      $region45: #{tpu_custom_call.1} parent=11 // pred_check
        %p296 = pneg %p231
      $region46: #{tpu_custom_call.1} parent=11 // pred_check_branch
        %298 = sbr.rel (%p296) target = $region48
      $region47: #{tpu_custom_call.1} parent=11 // pred_region
        _
      $region48: #{tpu_custom_call.1} parent=11 // pred_fallthru
        _
    $region12: #{tpu_custom_call.1} parent=5 // pred_fallthru
      _
    %p299 = scmp.lt.s32.totalorder %s16, 2
    // Predicated region
    $region49: #{tpu_custom_call.1} parent=5 // pred_check
      %p300 = pneg %p299
    $region50: #{tpu_custom_call.1} parent=5 // pred_check_branch
      %302 = sbr.rel (%p300) target = $region52
    $region51: #{tpu_custom_call.1} parent=5 // pred_region
      // Predicated region
      $region53: #{tpu_custom_call.1} parent=51 // pred_check
        %p303 = pneg %p36
      $region54: #{tpu_custom_call.1} parent=51 // pred_check_branch
        %305 = sbr.rel (%p303) target = $region56
      $region55: #{tpu_custom_call.1} parent=51 // pred_region
        %p306 = scmp.lt.s32.totalorder %s16, 1
        %s307 = scalar_select %p306, %s16, 1
        %s308 = smul.addr %s307, 2
        %s309 = smul.addr %s308, 8
        %s310 = scalar_lea.vmem %s0, %s309
      $region56: #{tpu_custom_call.1} parent=51 // pred_fallthru
        _
    $region52: #{tpu_custom_call.1} parent=5 // pred_fallthru
      _
    %p311 = scmp.le.s32.totalorder 1, %s16
    %p312 = scmp.lt.s32.totalorder %s16, 3
    %p313 = pnand %p311, %p312
    %p314 = pneg %p313
    // Predicated region
    $region57: #{tpu_custom_call.1} parent=5 // pred_check
      _
    $region58: #{tpu_custom_call.1} parent=5 // pred_check_branch
      %316 = sbr.rel (%p313) target = $region60
    $region59: #{tpu_custom_call.1} parent=5 // pred_region
      %s317 = ssub.s32 %s16, 1
      %p318 = scmp.lt.s32.totalorder %s21, 1
      %s319 = scalar_select %p318, %s21, 1
      %s320 = smul.addr %s319, 2
      %s321 = smul.addr %s320, 8
      %s322 = scalar_lea.vmem %s0, %s321
      %p323 = pneg %p42
      %p324 = pneg %p39
      %p325 = pneg %p63
      %p326 = pneg %p60
      %p327 = pneg %p84
      %p328 = pneg %p81
      %p329 = pneg %p105
      %p330 = pneg %p102
      %p331 = pneg %p126
      %p332 = pneg %p123
      %p333 = pneg %p147
      %p334 = pneg %p144
      %p335 = pneg %p168
      %p336 = pneg %p165
      %p337 = pneg %p189
      %p338 = pneg %p186
      %p339 = pneg %p210
      %p340 = pneg %p207
      %p341 = pneg %p231
      %p342 = pneg %p228
      %p343 = pneg %p257
      %p344 = pneg %p254
      %p345 = scmp.lt.s32.totalorder %s21, 1
      %s346 = scalar_select %p345, %s21, 1
      %s347 = smul.addr %s346, 2
      %s348 = smul.addr %s347, 8
      %s349 = scalar_lea.vmem %s10, %s348
      %p350 = scmp.lt.s32.totalorder %s21, 1
      %s351 = scalar_select %p350, %s21, 1
      %s352 = smul.addr %s351, 2
      %s353 = smul.addr %s352, 8
      %s354 = scalar_lea.vmem %s0, %s353
      %p355 = scmp.lt.s32.totalorder %s21, 1
      %s356 = scalar_select %p355, %s21, 1
      %s357 = smul.addr %s356, 2
      %s358 = smul.addr %s357, 8
      %s359 = scalar_lea.vmem %s10, %s358
      %v360 = vld [vmem:[%s2] sm:$0xff]
      %v361 = vld [vmem:[%s2 + $0x8] sm:$0xff]
      %v362 = vld [vmem:[%s2 + $0x10] sm:$0xff]
      %v363 = vld [vmem:[%s2 + $0x18] sm:$0xff]
      %v364 = vld [vmem:[%s5] sm:$0xff]
      %v365 = vld [vmem:[%s5 + $0x8] sm:$0xff]
      %v366 = vld [vmem:[%s5 + $0x10] sm:$0xff]
      %v367 = vld [vmem:[%s5 + $0x18] sm:$0xff]
      %v368 = vld [vmem:[%s3] sm:$0x1]
      %v370 = vperm.slane %v368, 0
      %v372 = vld [vmem:[%s6] sm:$0x1]
      %v374 = vperm.slane %v372, 0
      %v376 = vld [vmem:[%s354] sm:$0xff]
      %v377 = vld [vmem:[%s354 + $0x8] sm:$0xff]
      %v378 = vld [vmem:[%s1] sm:$0xff]
      %vm379 = vcmask 64512
      %v381 = vsel %vm379, %v376, 0
      %v384 = vsel %vm379, %v377, 0
      %386 = vmatpush.msra.mxu0 0.0
      %387 = vmatpush.msra.mxu0 0.0
      %388 = vmatpush.msra.mxu0 0.0
      %389 = vmatpush.msra.mxu0 0.0
      %390 = vmatpush.msra.mxu0 0.0
      %391 = vmatpush.msra.mxu0 0.0
      %392 = vmatpush.msra.mxu0 0.0
      %393 = vmatpush.msra.mxu0 0.0
      %394 = vmatpush.msra.mxu0 0.0
      %395 = vmatpush.msra.mxu0 0.0
      %396 = vmatpush.msra.mxu0 0.0
      %397 = vmatpush.msra.mxu0 0.0
      %398 = vmatpush.msra.mxu0 0.0
      %399 = vmatpush.msra.mxu0 0.0
      %400 = vmatpush.msra.mxu0 0.0
      %401 = vmatpush.msra.mxu0 %v378
      %402 = vmatmul.f32.gmra.mxu0 %v381
      %v403 = vpop.f32.mrf.mxu0
      %v404 = vadd.f32 0.0, %v403
      %405 = vmatmul.f32.gmra.mxu0 %v384
      %v406 = vpop.f32.mrf.mxu0
      %v407 = vadd.f32 0.0, %v406
      %408 = vdwg.mxu0
      %v409 = vld [vmem:[%s4] sm:$0xff]
      %410 = vmatpush.msra.mxu0 0.0
      %411 = vmatpush.msra.mxu0 0.0
      %412 = vmatpush.msra.mxu0 0.0
      %413 = vmatpush.msra.mxu0 0.0
      %414 = vmatpush.msra.mxu0 0.0
      %415 = vmatpush.msra.mxu0 0.0
      %416 = vmatpush.msra.mxu0 0.0
      %417 = vmatpush.msra.mxu0 0.0
      %418 = vmatpush.msra.mxu0 0.0
      %419 = vmatpush.msra.mxu0 0.0
      %420 = vmatpush.msra.mxu0 0.0
      %421 = vmatpush.msra.mxu0 0.0
      %422 = vmatpush.msra.mxu0 0.0
      %423 = vmatpush.msra.mxu0 0.0
      %424 = vmatpush.msra.mxu0 0.0
      %425 = vmatpush.msra.mxu0 %v409
      %426 = vmatmul.f32.gmra.mxu0 %v381
      %v427 = vpop.f32.mrf.mxu0
      %v428 = vadd.f32 0.0, %v427
      %429 = vmatmul.f32.gmra.mxu0 %v384
      %v430 = vpop.f32.mrf.mxu0
      %v431 = vadd.f32 0.0, %v430
      %432 = vdwg.mxu0
      %vm433 = vcmask 261120
      %v435 = vsel %vm433, 0.0, 0
      %437 = vmatpush.msra.mxu0 0.0
      %438 = vmatpush.msra.mxu0 0.0
      %439 = vmatpush.msra.mxu0 0.0
      %440 = vmatpush.msra.mxu0 0.0
      %441 = vmatpush.msra.mxu0 0.0
      %442 = vmatpush.msra.mxu0 0.0
      %443 = vmatpush.msra.mxu0 0.0
      %444 = vmatpush.msra.mxu0 0.0
      %445 = vmatpush.msra.mxu0 0.0
      %446 = vmatpush.msra.mxu0 0.0
      %447 = vmatpush.msra.mxu0 0.0
      %448 = vmatpush.msra.mxu0 0.0
      %449 = vmatpush.msra.mxu0 %v363
      %450 = vmatpush.msra.mxu0 %v362
      %451 = vmatpush.msra.mxu0 %v361
      %452 = vmatpush.msra.mxu0 %v360
      %453 = vmatmul.f32.gmra.mxu0 %v435
      %v454 = vpop.f32.mrf.mxu0
      %v455 = vadd.f32 0.0, %v454
      %456 = vdwg.mxu0
      %v457 = vadd.f32 %v404, %v455
      %v458 = vadd.f32 %v457, %v370
      %v459 = vxor.u32 %v458, 2147483648
      %v460 = vmul.f32 %v459, 1.442695
      %v461 = vpow.pop %v460
      %v462 = vadd.f32 %v461, 1.0
      %v463 = vrcp.pop %v462
      %v464 = vmul.f32 %v462, %v463
      %v465 = vsub.f32 1.0, %v464
      %v466 = vmul.f32 %v463, %v465
      %v467 = vadd.f32 %v463, %v466
      %vm468 = vweird.f32 %v462
      %vm469 = vweird.f32 %v463
      %vm470 = vmor %vm468, %vm469
      %v471 = vsel %vm470, %v463, %v467
      %v472 = vand.u32 2147483647, %v462
      %vm473 = vcmp.eq.f32.partialorder %v472, 8.507059e+37
      %v474 = vand.u32 %v462, 2147483648
      %v475 = vor.u32 1.1754944e-38, %v474
      %v476 = vsel %vm473, %v475, %v471
      %v477 = vmul.f32 1.0, %v476
      %v478 = vtanh.pop %v458
      %v479 = vmul.f32 %v477, 0.0
      %481 = vrot.lane.b32.xlu0 %v478, 64
      %v482 = vpop.permute.xlu0 %481
      %v484 = vmul.f32 %v477, %v482
      %486 = vrot.lane.b32.xlu0 %v484, 32
      %v487 = vpop.permute.xlu0 %486
      %v489 = vadd.f32 %v479, %v487
      %v490 = vtanh.pop %v489
      %492 = vrot.lane.b32.xlu0 %v490, 64
      %v493 = vpop.permute.xlu0 %492
      %v495 = vmul.f32 %v477, %v493
      %497 = vrot.lane.b32.xlu0 %v495, 32
      %v498 = vpop.permute.xlu0 %497
      %v499 = vsel %vm433, %v498, 0
      %501 = vmatpush.msra.mxu0 0.0
      %502 = vmatpush.msra.mxu0 0.0
      %503 = vmatpush.msra.mxu0 0.0
      %504 = vmatpush.msra.mxu0 0.0
      %505 = vmatpush.msra.mxu0 0.0
      %506 = vmatpush.msra.mxu0 0.0
      %507 = vmatpush.msra.mxu0 0.0
      %508 = vmatpush.msra.mxu0 0.0
      %509 = vmatpush.msra.mxu0 0.0
      %510 = vmatpush.msra.mxu0 0.0
      %511 = vmatpush.msra.mxu0 0.0
      %512 = vmatpush.msra.mxu0 0.0
      %513 = vmatpush.msra.mxu0 %v363
      %514 = vmatpush.msra.mxu0 %v362
      %515 = vmatpush.msra.mxu0 %v361
      %516 = vmatpush.msra.mxu0 %v360
      %517 = vmatmul.f32.gmra.mxu0 %v499
      %v518 = vpop.f32.mrf.mxu0
      %v519 = vadd.f32 0.0, %v518
      %520 = vdwg.mxu0
      %v522 = vrot.slane %v519, 6
      %v524 = vadd.f32 %v404, %v522
      %v525 = vadd.f32 %v524, %v370
      %v526 = vxor.u32 %v525, 2147483648
      %v527 = vmul.f32 %v526, 1.442695
      %v528 = vpow.pop %v527
      %v529 = vadd.f32 %v528, 1.0
      %v530 = vrcp.pop %v529
      %v531 = vmul.f32 %v529, %v530
      %v532 = vsub.f32 1.0, %v531
      %v533 = vmul.f32 %v530, %v532
      %v534 = vadd.f32 %v530, %v533
      %vm535 = vweird.f32 %v529
      %vm536 = vweird.f32 %v530
      %vm537 = vmor %vm535, %vm536
      %v538 = vsel %vm537, %v530, %v534
      %v539 = vand.u32 2147483647, %v529
      %vm540 = vcmp.eq.f32.partialorder %v539, 8.507059e+37
      %v541 = vand.u32 %v529, 2147483648
      %v542 = vor.u32 1.1754944e-38, %v541
      %v543 = vsel %vm540, %v542, %v538
      %v544 = vmul.f32 1.0, %v543
      %v545 = vtanh.pop %v525
      %v547 = vrot.slane %v489, 6
      %v549 = vmul.f32 %v544, %v547
      %551 = vrot.lane.b32.xlu0 %v545, 64
      %v552 = vpop.permute.xlu0 %551
      %v554 = vmul.f32 %v544, %v552
      %556 = vrot.lane.b32.xlu0 %v554, 32
      %v557 = vpop.permute.xlu0 %556
      %v559 = vadd.f32 %v549, %v557
      %v560 = vtanh.pop %v559
      %562 = vrot.lane.b32.xlu0 %v560, 64
      %v563 = vpop.permute.xlu0 %562
      %v565 = vmul.f32 %v544, %v563
      %v567 = vrot.slane %v565, 2
      %568 = vrot.lane.b32.xlu0 %v567, 32
      %v569 = vpop.permute.xlu0 %568
      %v570 = vsel %vm433, %v569, 0
      %572 = vmatpush.msra.mxu0 0.0
      %573 = vmatpush.msra.mxu0 0.0
      %574 = vmatpush.msra.mxu0 0.0
      %575 = vmatpush.msra.mxu0 0.0
      %576 = vmatpush.msra.mxu0 0.0
      %577 = vmatpush.msra.mxu0 0.0
      %578 = vmatpush.msra.mxu0 0.0
      %579 = vmatpush.msra.mxu0 0.0
      %580 = vmatpush.msra.mxu0 0.0
      %581 = vmatpush.msra.mxu0 0.0
      %582 = vmatpush.msra.mxu0 0.0
      %583 = vmatpush.msra.mxu0 0.0
      %584 = vmatpush.msra.mxu0 %v363
      %585 = vmatpush.msra.mxu0 %v362
      %586 = vmatpush.msra.mxu0 %v361
      %587 = vmatpush.msra.mxu0 %v360
      %588 = vmatmul.f32.gmra.mxu0 %v570
      %v589 = vpop.f32.mrf.mxu0
      %v590 = vadd.f32 0.0, %v589
      %591 = vdwg.mxu0
      %v593 = vrot.slane %v590, 4
      %v595 = vadd.f32 %v404, %v593
      %v596 = vadd.f32 %v595, %v370
      %v597 = vxor.u32 %v596, 2147483648
      %v598 = vmul.f32 %v597, 1.442695
      %v599 = vpow.pop %v598
      %v600 = vadd.f32 %v599, 1.0
      %v601 = vrcp.pop %v600
      %v602 = vmul.f32 %v600, %v601
      %v603 = vsub.f32 1.0, %v602
      %v604 = vmul.f32 %v601, %v603
      %v605 = vadd.f32 %v601, %v604
      %vm606 = vweird.f32 %v600
      %vm607 = vweird.f32 %v601
      %vm608 = vmor %vm606, %vm607
      %v609 = vsel %vm608, %v601, %v605
      %v610 = vand.u32 2147483647, %v600
      %vm611 = vcmp.eq.f32.partialorder %v610, 8.507059e+37
      %v612 = vand.u32 %v600, 2147483648
      %v613 = vor.u32 1.1754944e-38, %v612
      %v614 = vsel %vm611, %v613, %v609
      %v615 = vmul.f32 1.0, %v614
      %v616 = vtanh.pop %v596
      %v618 = vrot.slane %v559, 6
      %v620 = vmul.f32 %v615, %v618
      %622 = vrot.lane.b32.xlu0 %v616, 64
      %v623 = vpop.permute.xlu0 %622
      %v625 = vmul.f32 %v615, %v623
      %627 = vrot.lane.b32.xlu0 %v625, 32
      %v628 = vpop.permute.xlu0 %627
      %v630 = vadd.f32 %v620, %v628
      %v631 = vtanh.pop %v630
      %633 = vrot.lane.b32.xlu0 %v631, 64
      %v634 = vpop.permute.xlu0 %633
      %v636 = vmul.f32 %v615, %v634
      %v638 = vrot.slane %v636, 4
      %639 = vrot.lane.b32.xlu0 %v638, 32
      %v640 = vpop.permute.xlu0 %639
      %v641 = vsel %vm433, %v640, 0
      %643 = vmatpush.msra.mxu0 0.0
      %644 = vmatpush.msra.mxu0 0.0
      %645 = vmatpush.msra.mxu0 0.0
      %646 = vmatpush.msra.mxu0 0.0
      %647 = vmatpush.msra.mxu0 0.0
      %648 = vmatpush.msra.mxu0 0.0
      %649 = vmatpush.msra.mxu0 0.0
      %650 = vmatpush.msra.mxu0 0.0
      %651 = vmatpush.msra.mxu0 0.0
      %652 = vmatpush.msra.mxu0 0.0
      %653 = vmatpush.msra.mxu0 0.0
      %654 = vmatpush.msra.mxu0 0.0
      %655 = vmatpush.msra.mxu0 %v363
      %656 = vmatpush.msra.mxu0 %v362
      %657 = vmatpush.msra.mxu0 %v361
      %658 = vmatpush.msra.mxu0 %v360
      %659 = vmatmul.f32.gmra.mxu0 %v641
      %v660 = vpop.f32.mrf.mxu0
      %v661 = vadd.f32 0.0, %v660
      %662 = vdwg.mxu0
      %v664 = vrot.slane %v661, 2
      %v666 = vadd.f32 %v404, %v664
      %v667 = vadd.f32 %v666, %v370
      %v668 = vxor.u32 %v667, 2147483648
      %v669 = vmul.f32 %v668, 1.442695
      %v670 = vpow.pop %v669
      %v671 = vadd.f32 %v670, 1.0
      %v672 = vrcp.pop %v671
      %v673 = vmul.f32 %v671, %v672
      %v674 = vsub.f32 1.0, %v673
      %v675 = vmul.f32 %v672, %v674
      %v676 = vadd.f32 %v672, %v675
      %vm677 = vweird.f32 %v671
      %vm678 = vweird.f32 %v672
      %vm679 = vmor %vm677, %vm678
      %v680 = vsel %vm679, %v672, %v676
      %v681 = vand.u32 2147483647, %v671
      %vm682 = vcmp.eq.f32.partialorder %v681, 8.507059e+37
      %v683 = vand.u32 %v671, 2147483648
      %v684 = vor.u32 1.1754944e-38, %v683
      %v685 = vsel %vm682, %v684, %v680
      %v686 = vmul.f32 1.0, %v685
      %v687 = vtanh.pop %v667
      %v689 = vrot.slane %v630, 6
      %v691 = vmul.f32 %v686, %v689
      %693 = vrot.lane.b32.xlu0 %v687, 64
      %v694 = vpop.permute.xlu0 %693
      %v696 = vmul.f32 %v686, %v694
      %698 = vrot.lane.b32.xlu0 %v696, 32
      %v699 = vpop.permute.xlu0 %698
      %v701 = vadd.f32 %v691, %v699
      %v702 = vtanh.pop %v701
      %704 = vrot.lane.b32.xlu0 %v702, 64
      %v705 = vpop.permute.xlu0 %704
      %v707 = vmul.f32 %v686, %v705
      %v709 = vrot.slane %v707, 6
      %710 = vrot.lane.b32.xlu0 %v709, 32
      %v711 = vpop.permute.xlu0 %710
      %v712 = vsel %vm433, %v711, 0
      %714 = vmatpush.msra.mxu0 0.0
      %715 = vmatpush.msra.mxu0 0.0
      %716 = vmatpush.msra.mxu0 0.0
      %717 = vmatpush.msra.mxu0 0.0
      %718 = vmatpush.msra.mxu0 0.0
      %719 = vmatpush.msra.mxu0 0.0
      %720 = vmatpush.msra.mxu0 0.0
      %721 = vmatpush.msra.mxu0 0.0
      %722 = vmatpush.msra.mxu0 0.0
      %723 = vmatpush.msra.mxu0 0.0
      %724 = vmatpush.msra.mxu0 0.0
      %725 = vmatpush.msra.mxu0 0.0
      %726 = vmatpush.msra.mxu0 %v363
      %727 = vmatpush.msra.mxu0 %v362
      %728 = vmatpush.msra.mxu0 %v361
      %729 = vmatpush.msra.mxu0 %v360
      %730 = vmatmul.f32.gmra.mxu0 %v712
      %v731 = vpop.f32.mrf.mxu0
      %v732 = vadd.f32 0.0, %v731
      %733 = vdwg.mxu0
      %v734 = vadd.f32 %v407, %v732
      %v735 = vadd.f32 %v734, %v370
      %v736 = vxor.u32 %v735, 2147483648
      %v737 = vmul.f32 %v736, 1.442695
      %v738 = vpow.pop %v737
      %v739 = vadd.f32 %v738, 1.0
      %v740 = vrcp.pop %v739
      %v741 = vmul.f32 %v739, %v740
      %v742 = vsub.f32 1.0, %v741
      %v743 = vmul.f32 %v740, %v742
      %v744 = vadd.f32 %v740, %v743
      %vm745 = vweird.f32 %v739
      %vm746 = vweird.f32 %v740
      %vm747 = vmor %vm745, %vm746
      %v748 = vsel %vm747, %v740, %v744
      %v749 = vand.u32 2147483647, %v739
      %vm750 = vcmp.eq.f32.partialorder %v749, 8.507059e+37
      %v751 = vand.u32 %v739, 2147483648
      %v752 = vor.u32 1.1754944e-38, %v751
      %v753 = vsel %vm750, %v752, %v748
      %v754 = vmul.f32 1.0, %v753
      %v755 = vtanh.pop %v735
      %v757 = vrot.slane %v701, 6
      %v759 = vmul.f32 %v754, %v757
      %761 = vrot.lane.b32.xlu0 %v755, 64
      %v762 = vpop.permute.xlu0 %761
      %v764 = vmul.f32 %v754, %v762
      %766 = vrot.lane.b32.xlu0 %v764, 32
      %v767 = vpop.permute.xlu0 %766
      %v769 = vadd.f32 %v759, %v767
      %v770 = vtanh.pop %v769
      %772 = vrot.lane.b32.xlu0 %v770, 64
      %v773 = vpop.permute.xlu0 %772
      %v775 = vmul.f32 %v754, %v773
      %777 = vrot.lane.b32.xlu0 %v775, 32
      %v778 = vpop.permute.xlu0 %777
      %v779 = vsel %vm433, %v778, 0
      %781 = vmatpush.msra.mxu0 0.0
      %782 = vmatpush.msra.mxu0 0.0
      %783 = vmatpush.msra.mxu0 0.0
      %784 = vmatpush.msra.mxu0 0.0
      %785 = vmatpush.msra.mxu0 0.0
      %786 = vmatpush.msra.mxu0 0.0
      %787 = vmatpush.msra.mxu0 0.0
      %788 = vmatpush.msra.mxu0 0.0
      %789 = vmatpush.msra.mxu0 0.0
      %790 = vmatpush.msra.mxu0 0.0
      %791 = vmatpush.msra.mxu0 0.0
      %792 = vmatpush.msra.mxu0 0.0
      %793 = vmatpush.msra.mxu0 %v363
      %794 = vmatpush.msra.mxu0 %v362
      %795 = vmatpush.msra.mxu0 %v361
      %796 = vmatpush.msra.mxu0 %v360
      %797 = vmatmul.f32.gmra.mxu0 %v779
      %v798 = vpop.f32.mrf.mxu0
      %v799 = vadd.f32 0.0, %v798
      %800 = vdwg.mxu0
      %v802 = vrot.slane %v799, 6
      %v804 = vadd.f32 %v407, %v802
      %v805 = vadd.f32 %v804, %v370
      %v806 = vxor.u32 %v805, 2147483648
      %v807 = vmul.f32 %v806, 1.442695
      %v808 = vpow.pop %v807
      %v809 = vadd.f32 %v808, 1.0
      %v810 = vrcp.pop %v809
      %v811 = vmul.f32 %v809, %v810
      %v812 = vsub.f32 1.0, %v811
      %v813 = vmul.f32 %v810, %v812
      %v814 = vadd.f32 %v810, %v813
      %vm815 = vweird.f32 %v809
      %vm816 = vweird.f32 %v810
      %vm817 = vmor %vm815, %vm816
      %v818 = vsel %vm817, %v810, %v814
      %v819 = vand.u32 2147483647, %v809
      %vm820 = vcmp.eq.f32.partialorder %v819, 8.507059e+37
      %v821 = vand.u32 %v809, 2147483648
      %v822 = vor.u32 1.1754944e-38, %v821
      %v823 = vsel %vm820, %v822, %v818
      %v824 = vmul.f32 1.0, %v823
      %v825 = vtanh.pop %v805
      %v827 = vrot.slane %v769, 6
      %v829 = vmul.f32 %v824, %v827
      %831 = vrot.lane.b32.xlu0 %v825, 64
      %v832 = vpop.permute.xlu0 %831
      %v834 = vmul.f32 %v824, %v832
      %836 = vrot.lane.b32.xlu0 %v834, 32
      %v837 = vpop.permute.xlu0 %836
      %v839 = vadd.f32 %v829, %v837
      %v840 = vtanh.pop %v839
      %842 = vrot.lane.b32.xlu0 %v840, 64
      %v843 = vpop.permute.xlu0 %842
      %v845 = vmul.f32 %v824, %v843
      %v847 = vrot.slane %v845, 2
      %848 = vrot.lane.b32.xlu0 %v847, 32
      %v849 = vpop.permute.xlu0 %848
      %v850 = vsel %vm433, %v849, 0
      %852 = vmatpush.msra.mxu0 0.0
      %853 = vmatpush.msra.mxu0 0.0
      %854 = vmatpush.msra.mxu0 0.0
      %855 = vmatpush.msra.mxu0 0.0
      %856 = vmatpush.msra.mxu0 0.0
      %857 = vmatpush.msra.mxu0 0.0
      %858 = vmatpush.msra.mxu0 0.0
      %859 = vmatpush.msra.mxu0 0.0
      %860 = vmatpush.msra.mxu0 0.0
      %861 = vmatpush.msra.mxu0 0.0
      %862 = vmatpush.msra.mxu0 0.0
      %863 = vmatpush.msra.mxu0 0.0
      %864 = vmatpush.msra.mxu0 %v363
      %865 = vmatpush.msra.mxu0 %v362
      %866 = vmatpush.msra.mxu0 %v361
      %867 = vmatpush.msra.mxu0 %v360
      %868 = vmatmul.f32.gmra.mxu0 %v850
      %v869 = vpop.f32.mrf.mxu0
      %v870 = vadd.f32 0.0, %v869
      %871 = vdwg.mxu0
      %v873 = vrot.slane %v870, 4
      %v875 = vadd.f32 %v407, %v873
      %v876 = vadd.f32 %v875, %v370
      %v877 = vxor.u32 %v876, 2147483648
      %v878 = vmul.f32 %v877, 1.442695
      %v879 = vpow.pop %v878
      %v880 = vadd.f32 %v879, 1.0
      %v881 = vrcp.pop %v880
      %v882 = vmul.f32 %v880, %v881
      %v883 = vsub.f32 1.0, %v882
      %v884 = vmul.f32 %v881, %v883
      %v885 = vadd.f32 %v881, %v884
      %vm886 = vweird.f32 %v880
      %vm887 = vweird.f32 %v881
      %vm888 = vmor %vm886, %vm887
      %v889 = vsel %vm888, %v881, %v885
      %v890 = vand.u32 2147483647, %v880
      %vm891 = vcmp.eq.f32.partialorder %v890, 8.507059e+37
      %v892 = vand.u32 %v880, 2147483648
      %v893 = vor.u32 1.1754944e-38, %v892
      %v894 = vsel %vm891, %v893, %v889
      %v895 = vmul.f32 1.0, %v894
      %v896 = vtanh.pop %v876
      %v898 = vrot.slane %v839, 6
      %v900 = vmul.f32 %v895, %v898
      %902 = vrot.lane.b32.xlu0 %v896, 64
      %v903 = vpop.permute.xlu0 %902
      %v905 = vmul.f32 %v895, %v903
      %907 = vrot.lane.b32.xlu0 %v905, 32
      %v908 = vpop.permute.xlu0 %907
      %v910 = vadd.f32 %v900, %v908
      %v911 = vtanh.pop %v910
      %913 = vrot.lane.b32.xlu0 %v911, 64
      %v914 = vpop.permute.xlu0 %913
      %v916 = vmul.f32 %v895, %v914
      %v918 = vrot.slane %v916, 4
      %919 = vrot.lane.b32.xlu0 %v918, 32
      %v920 = vpop.permute.xlu0 %919
      %v921 = vsel %vm433, %v920, 0
      %923 = vmatpush.msra.mxu0 0.0
      %924 = vmatpush.msra.mxu0 0.0
      %925 = vmatpush.msra.mxu0 0.0
      %926 = vmatpush.msra.mxu0 0.0
      %927 = vmatpush.msra.mxu0 0.0
      %928 = vmatpush.msra.mxu0 0.0
      %929 = vmatpush.msra.mxu0 0.0
      %930 = vmatpush.msra.mxu0 0.0
      %931 = vmatpush.msra.mxu0 0.0
      %932 = vmatpush.msra.mxu0 0.0
      %933 = vmatpush.msra.mxu0 0.0
      %934 = vmatpush.msra.mxu0 0.0
      %935 = vmatpush.msra.mxu0 %v363
      %936 = vmatpush.msra.mxu0 %v362
      %937 = vmatpush.msra.mxu0 %v361
      %938 = vmatpush.msra.mxu0 %v360
      %939 = vmatmul.f32.gmra.mxu0 %v921
      %v940 = vpop.f32.mrf.mxu0
      %v941 = vadd.f32 0.0, %v940
      %942 = vdwg.mxu0
      %v944 = vrot.slane %v941, 2
      %v946 = vadd.f32 %v407, %v944
      %v947 = vadd.f32 %v946, %v370
      %v948 = vxor.u32 %v947, 2147483648
      %v949 = vmul.f32 %v948, 1.442695
      %v950 = vpow.pop %v949
      %v951 = vadd.f32 %v950, 1.0
      %v952 = vrcp.pop %v951
      %v953 = vmul.f32 %v951, %v952
      %v954 = vsub.f32 1.0, %v953
      %v955 = vmul.f32 %v952, %v954
      %v956 = vadd.f32 %v952, %v955
      %vm957 = vweird.f32 %v951
      %vm958 = vweird.f32 %v952
      %vm959 = vmor %vm957, %vm958
      %v960 = vsel %vm959, %v952, %v956
      %v961 = vand.u32 2147483647, %v951
      %vm962 = vcmp.eq.f32.partialorder %v961, 8.507059e+37
      %v963 = vand.u32 %v951, 2147483648
      %v964 = vor.u32 1.1754944e-38, %v963
      %v965 = vsel %vm962, %v964, %v960
      %v966 = vmul.f32 1.0, %v965
      %v967 = vtanh.pop %v947
      %v969 = vrot.slane %v910, 6
      %v971 = vmul.f32 %v966, %v969
      %973 = vrot.lane.b32.xlu0 %v967, 64
      %v974 = vpop.permute.xlu0 %973
      %v976 = vmul.f32 %v966, %v974
      %978 = vrot.lane.b32.xlu0 %v976, 32
      %v979 = vpop.permute.xlu0 %978
      %v981 = vadd.f32 %v971, %v979
      %v982 = vtanh.pop %v981
      %984 = vrot.lane.b32.xlu0 %v982, 64
      %v985 = vpop.permute.xlu0 %984
      %v987 = vmul.f32 %v966, %v985
      %v989 = vrot.slane %v987, 6
      %990 = vrot.lane.b32.xlu0 %v989, 32
      %v991 = vpop.permute.xlu0 %990
      %v992 = vsel %vm433, %v991, 0
      %994 = vmatpush.msra.mxu0 0.0
      %995 = vmatpush.msra.mxu0 0.0
      %996 = vmatpush.msra.mxu0 0.0
      %997 = vmatpush.msra.mxu0 0.0
      %998 = vmatpush.msra.mxu0 0.0
      %999 = vmatpush.msra.mxu0 0.0
      %1000 = vmatpush.msra.mxu0 0.0
      %1001 = vmatpush.msra.mxu0 0.0
      %1002 = vmatpush.msra.mxu0 0.0
      %1003 = vmatpush.msra.mxu0 0.0
      %1004 = vmatpush.msra.mxu0 0.0
      %1005 = vmatpush.msra.mxu0 0.0
      %1006 = vmatpush.msra.mxu0 %v367
      %1007 = vmatpush.msra.mxu0 %v366
      %1008 = vmatpush.msra.mxu0 %v365
      %1009 = vmatpush.msra.mxu0 %v364
      %1010 = vmatmul.f32.gmra.mxu0 %v992
      %v1011 = vpop.f32.mrf.mxu0
      %v1012 = vadd.f32 0.0, %v1011
      %1013 = vdwg.mxu0
      %v1014 = vadd.f32 %v428, %v1012
      %v1015 = vadd.f32 %v1014, %v374
      %v1016 = vxor.u32 %v1015, 2147483648
      %v1017 = vmul.f32 %v1016, 1.442695
      %v1018 = vpow.pop %v1017
      %v1019 = vadd.f32 %v1018, 1.0
      %v1020 = vrcp.pop %v1019
      %v1021 = vmul.f32 %v1019, %v1020
      %v1022 = vsub.f32 1.0, %v1021
      %v1023 = vmul.f32 %v1020, %v1022
      %v1024 = vadd.f32 %v1020, %v1023
      %vm1025 = vweird.f32 %v1019
      %vm1026 = vweird.f32 %v1020
      %vm1027 = vmor %vm1025, %vm1026
      %v1028 = vsel %vm1027, %v1020, %v1024
      %v1029 = vand.u32 2147483647, %v1019
      %vm1030 = vcmp.eq.f32.partialorder %v1029, 8.507059e+37
      %v1031 = vand.u32 %v1019, 2147483648
      %v1032 = vor.u32 1.1754944e-38, %v1031
      %v1033 = vsel %vm1030, %v1032, %v1028
      %v1034 = vmul.f32 1.0, %v1033
      %v1035 = vtanh.pop %v1015
      %v1037 = vrot.slane %v981, 6
      %v1039 = vmul.f32 %v1034, %v1037
      %1041 = vrot.lane.b32.xlu0 %v1035, 64
      %v1042 = vpop.permute.xlu0 %1041
      %v1044 = vmul.f32 %v1034, %v1042
      %1046 = vrot.lane.b32.xlu0 %v1044, 32
      %v1047 = vpop.permute.xlu0 %1046
      %v1049 = vadd.f32 %v1039, %v1047
      %v1050 = vtanh.pop %v1049
      %1052 = vrot.lane.b32.xlu0 %v1050, 64
      %v1053 = vpop.permute.xlu0 %1052
      %v1055 = vmul.f32 %v1034, %v1053
      %1057 = vrot.lane.b32.xlu0 %v1055, 32
      %v1058 = vpop.permute.xlu0 %1057
      %v1059 = vsel %vm433, %v1058, 0
      %1061 = vmatpush.msra.mxu0 0.0
      %1062 = vmatpush.msra.mxu0 0.0
      %1063 = vmatpush.msra.mxu0 0.0
      %1064 = vmatpush.msra.mxu0 0.0
      %1065 = vmatpush.msra.mxu0 0.0
      %1066 = vmatpush.msra.mxu0 0.0
      %1067 = vmatpush.msra.mxu0 0.0
      %1068 = vmatpush.msra.mxu0 0.0
      %1069 = vmatpush.msra.mxu0 0.0
      %1070 = vmatpush.msra.mxu0 0.0
      %1071 = vmatpush.msra.mxu0 0.0
      %1072 = vmatpush.msra.mxu0 0.0
      %1073 = vmatpush.msra.mxu0 %v367
      %1074 = vmatpush.msra.mxu0 %v366
      %1075 = vmatpush.msra.mxu0 %v365
      %1076 = vmatpush.msra.mxu0 %v364
      %1077 = vmatmul.f32.gmra.mxu0 %v1059
      %v1078 = vpop.f32.mrf.mxu0
      %v1079 = vadd.f32 0.0, %v1078
      %1080 = vdwg.mxu0
      %v1082 = vrot.slane %v1079, 6
      %v1084 = vadd.f32 %v428, %v1082
      %v1085 = vadd.f32 %v1084, %v374
      %v1086 = vxor.u32 %v1085, 2147483648
      %v1087 = vmul.f32 %v1086, 1.442695
      %v1088 = vpow.pop %v1087
      %v1089 = vadd.f32 %v1088, 1.0
      %v1090 = vrcp.pop %v1089
      %v1091 = vmul.f32 %v1089, %v1090
      %v1092 = vsub.f32 1.0, %v1091
      %v1093 = vmul.f32 %v1090, %v1092
      %v1094 = vadd.f32 %v1090, %v1093
      %vm1095 = vweird.f32 %v1089
      %vm1096 = vweird.f32 %v1090
      %vm1097 = vmor %vm1095, %vm1096
      %v1098 = vsel %vm1097, %v1090, %v1094
      %v1099 = vand.u32 2147483647, %v1089
      %vm1100 = vcmp.eq.f32.partialorder %v1099, 8.507059e+37
      %v1101 = vand.u32 %v1089, 2147483648
      %v1102 = vor.u32 1.1754944e-38, %v1101
      %v1103 = vsel %vm1100, %v1102, %v1098
      %v1104 = vmul.f32 1.0, %v1103
      %v1105 = vtanh.pop %v1085
      %v1106 = vrot.slane %v981, 4
      %v1108 = vmul.f32 %v1104, %v1106
      %1110 = vrot.lane.b32.xlu0 %v1105, 64
      %v1111 = vpop.permute.xlu0 %1110
      %v1113 = vmul.f32 %v1104, %v1111
      %1115 = vrot.lane.b32.xlu0 %v1113, 32
      %v1116 = vpop.permute.xlu0 %1115
      %v1118 = vadd.f32 %v1108, %v1116
      %v1119 = vtanh.pop %v1118
      %1121 = vrot.lane.b32.xlu0 %v1119, 64
      %v1122 = vpop.permute.xlu0 %1121
      %v1124 = vmul.f32 %v1104, %v1122
      %v1126 = vrot.slane %v1124, 2
      %1127 = vrot.lane.b32.xlu0 %v1126, 32
      %v1128 = vpop.permute.xlu0 %1127
      %v1129 = vsel %vm433, %v1128, 0
      %1131 = vmatpush.msra.mxu0 0.0
      %1132 = vmatpush.msra.mxu0 0.0
      %1133 = vmatpush.msra.mxu0 0.0
      %1134 = vmatpush.msra.mxu0 0.0
      %1135 = vmatpush.msra.mxu0 0.0
      %1136 = vmatpush.msra.mxu0 0.0
      %1137 = vmatpush.msra.mxu0 0.0
      %1138 = vmatpush.msra.mxu0 0.0
      %1139 = vmatpush.msra.mxu0 0.0
      %1140 = vmatpush.msra.mxu0 0.0
      %1141 = vmatpush.msra.mxu0 0.0
      %1142 = vmatpush.msra.mxu0 0.0
      %1143 = vmatpush.msra.mxu0 %v367
      %1144 = vmatpush.msra.mxu0 %v366
      %1145 = vmatpush.msra.mxu0 %v365
      %1146 = vmatpush.msra.mxu0 %v364
      %1147 = vmatmul.f32.gmra.mxu0 %v1129
      %v1148 = vpop.f32.mrf.mxu0
      %v1149 = vadd.f32 0.0, %v1148
      %1150 = vdwg.mxu0
      %v1152 = vrot.slane %v1149, 4
      %v1154 = vadd.f32 %v428, %v1152
      %v1155 = vadd.f32 %v1154, %v374
      %v1156 = vxor.u32 %v1155, 2147483648
      %v1157 = vmul.f32 %v1156, 1.442695
      %v1158 = vpow.pop %v1157
      %v1159 = vadd.f32 %v1158, 1.0
      %v1160 = vrcp.pop %v1159
      %v1161 = vmul.f32 %v1159, %v1160
      %v1162 = vsub.f32 1.0, %v1161
      %v1163 = vmul.f32 %v1160, %v1162
      %v1164 = vadd.f32 %v1160, %v1163
      %vm1165 = vweird.f32 %v1159
      %vm1166 = vweird.f32 %v1160
      %vm1167 = vmor %vm1165, %vm1166
      %v1168 = vsel %vm1167, %v1160, %v1164
      %v1169 = vand.u32 2147483647, %v1159
      %vm1170 = vcmp.eq.f32.partialorder %v1169, 8.507059e+37
      %v1171 = vand.u32 %v1159, 2147483648
      %v1172 = vor.u32 1.1754944e-38, %v1171
      %v1173 = vsel %vm1170, %v1172, %v1168
      %v1174 = vmul.f32 1.0, %v1173
      %v1175 = vtanh.pop %v1155
      %v1176 = vrot.slane %v981, 2
      %v1178 = vmul.f32 %v1174, %v1176
      %1180 = vrot.lane.b32.xlu0 %v1175, 64
      %v1181 = vpop.permute.xlu0 %1180
      %v1183 = vmul.f32 %v1174, %v1181
      %1185 = vrot.lane.b32.xlu0 %v1183, 32
      %v1186 = vpop.permute.xlu0 %1185
      %v1188 = vadd.f32 %v1178, %v1186
      %v1189 = vtanh.pop %v1188
      %1191 = vrot.lane.b32.xlu0 %v1189, 64
      %v1192 = vpop.permute.xlu0 %1191
      %v1194 = vmul.f32 %v1174, %v1192
      %v1196 = vrot.slane %v1194, 4
      %1197 = vrot.lane.b32.xlu0 %v1196, 32
      %v1198 = vpop.permute.xlu0 %1197
      %v1199 = vsel %vm433, %v1198, 0
      %1201 = vmatpush.msra.mxu0 0.0
      %1202 = vmatpush.msra.mxu0 0.0
      %1203 = vmatpush.msra.mxu0 0.0
      %1204 = vmatpush.msra.mxu0 0.0
      %1205 = vmatpush.msra.mxu0 0.0
      %1206 = vmatpush.msra.mxu0 0.0
      %1207 = vmatpush.msra.mxu0 0.0
      %1208 = vmatpush.msra.mxu0 0.0
      %1209 = vmatpush.msra.mxu0 0.0
      %1210 = vmatpush.msra.mxu0 0.0
      %1211 = vmatpush.msra.mxu0 0.0
      %1212 = vmatpush.msra.mxu0 0.0
      %1213 = vmatpush.msra.mxu0 %v367
      %1214 = vmatpush.msra.mxu0 %v366
      %1215 = vmatpush.msra.mxu0 %v365
      %1216 = vmatpush.msra.mxu0 %v364
      %1217 = vmatmul.f32.gmra.mxu0 %v1199
      %v1218 = vpop.f32.mrf.mxu0
      %v1219 = vadd.f32 0.0, %v1218
      %1220 = vdwg.mxu0
      %v1222 = vrot.slane %v1219, 2
      %v1224 = vadd.f32 %v428, %v1222
      %v1225 = vadd.f32 %v1224, %v374
      %v1226 = vxor.u32 %v1225, 2147483648
      %v1227 = vmul.f32 %v1226, 1.442695
      %v1228 = vpow.pop %v1227
      %v1229 = vadd.f32 %v1228, 1.0
      %v1230 = vrcp.pop %v1229
      %v1231 = vmul.f32 %v1229, %v1230
      %v1232 = vsub.f32 1.0, %v1231
      %v1233 = vmul.f32 %v1230, %v1232
      %v1234 = vadd.f32 %v1230, %v1233
      %vm1235 = vweird.f32 %v1229
      %vm1236 = vweird.f32 %v1230
      %vm1237 = vmor %vm1235, %vm1236
      %v1238 = vsel %vm1237, %v1230, %v1234
      %v1239 = vand.u32 2147483647, %v1229
      %vm1240 = vcmp.eq.f32.partialorder %v1239, 8.507059e+37
      %v1241 = vand.u32 %v1229, 2147483648
      %v1242 = vor.u32 1.1754944e-38, %v1241
      %v1243 = vsel %vm1240, %v1242, %v1238
      %v1244 = vmul.f32 1.0, %v1243
      %v1245 = vtanh.pop %v1225
      %v1246 = vmul.f32 %v1244, %v981
      %1248 = vrot.lane.b32.xlu0 %v1245, 64
      %v1249 = vpop.permute.xlu0 %1248
      %v1251 = vmul.f32 %v1244, %v1249
      %1253 = vrot.lane.b32.xlu0 %v1251, 32
      %v1254 = vpop.permute.xlu0 %1253
      %v1256 = vadd.f32 %v1246, %v1254
      %v1257 = vtanh.pop %v1256
      %1259 = vrot.lane.b32.xlu0 %v1257, 64
      %v1260 = vpop.permute.xlu0 %1259
      %v1262 = vmul.f32 %v1244, %v1260
      %v1264 = vrot.slane %v1262, 6
      %1265 = vrot.lane.b32.xlu0 %v1264, 32
      %v1266 = vpop.permute.xlu0 %1265
      %v1267 = vsel %vm433, %v1266, 0
      %1269 = vmatpush.msra.mxu0 0.0
      %1270 = vmatpush.msra.mxu0 0.0
      %1271 = vmatpush.msra.mxu0 0.0
      %1272 = vmatpush.msra.mxu0 0.0
      %1273 = vmatpush.msra.mxu0 0.0
      %1274 = vmatpush.msra.mxu0 0.0
      %1275 = vmatpush.msra.mxu0 0.0
      %1276 = vmatpush.msra.mxu0 0.0
      %1277 = vmatpush.msra.mxu0 0.0
      %1278 = vmatpush.msra.mxu0 0.0
      %1279 = vmatpush.msra.mxu0 0.0
      %1280 = vmatpush.msra.mxu0 0.0
      %1281 = vmatpush.msra.mxu0 %v367
      %1282 = vmatpush.msra.mxu0 %v366
      %1283 = vmatpush.msra.mxu0 %v365
      %1284 = vmatpush.msra.mxu0 %v364
      %1285 = vmatmul.f32.gmra.mxu0 %v1267
      %v1286 = vpop.f32.mrf.mxu0
      %v1287 = vadd.f32 0.0, %v1286
      %1288 = vdwg.mxu0
      %v1289 = vadd.f32 %v431, %v1287
      %v1290 = vadd.f32 %v1289, %v374
      %v1291 = vxor.u32 %v1290, 2147483648
      %v1292 = vmul.f32 %v1291, 1.442695
      %v1293 = vpow.pop %v1292
      %v1294 = vadd.f32 %v1293, 1.0
      %v1295 = vrcp.pop %v1294
      %v1296 = vmul.f32 %v1294, %v1295
      %v1297 = vsub.f32 1.0, %v1296
      %v1298 = vmul.f32 %v1295, %v1297
      %v1299 = vadd.f32 %v1295, %v1298
      %vm1300 = vweird.f32 %v1294
      %vm1301 = vweird.f32 %v1295
      %vm1302 = vmor %vm1300, %vm1301
      %v1303 = vsel %vm1302, %v1295, %v1299
      %v1304 = vand.u32 2147483647, %v1294
      %vm1305 = vcmp.eq.f32.partialorder %v1304, 8.507059e+37
      %v1306 = vand.u32 %v1294, 2147483648
      %v1307 = vor.u32 1.1754944e-38, %v1306
      %v1308 = vsel %vm1305, %v1307, %v1303
      %v1309 = vmul.f32 1.0, %v1308
      %v1310 = vtanh.pop %v1290
      %v1311 = vmul.f32 %v1309, %v1037
      %1313 = vrot.lane.b32.xlu0 %v1310, 64
      %v1314 = vpop.permute.xlu0 %1313
      %v1316 = vmul.f32 %v1309, %v1314
      %1318 = vrot.lane.b32.xlu0 %v1316, 32
      %v1319 = vpop.permute.xlu0 %1318
      %v1321 = vadd.f32 %v1311, %v1319
      %v1322 = vtanh.pop %v1321
      %1324 = vrot.lane.b32.xlu0 %v1322, 64
      %v1325 = vpop.permute.xlu0 %1324
      %v1327 = vmul.f32 %v1309, %v1325
      %1329 = vrot.lane.b32.xlu0 %v1327, 32
      %v1330 = vpop.permute.xlu0 %1329
      %v1331 = vsel %vm433, %v1330, 0
      %1333 = vmatpush.msra.mxu0 0.0
      %1334 = vmatpush.msra.mxu0 0.0
      %1335 = vmatpush.msra.mxu0 0.0
      %1336 = vmatpush.msra.mxu0 0.0
      %1337 = vmatpush.msra.mxu0 0.0
      %1338 = vmatpush.msra.mxu0 0.0
      %1339 = vmatpush.msra.mxu0 0.0
      %1340 = vmatpush.msra.mxu0 0.0
      %1341 = vmatpush.msra.mxu0 0.0
      %1342 = vmatpush.msra.mxu0 0.0
      %1343 = vmatpush.msra.mxu0 0.0
      %1344 = vmatpush.msra.mxu0 0.0
      %1345 = vmatpush.msra.mxu0 %v367
      %1346 = vmatpush.msra.mxu0 %v366
      %1347 = vmatpush.msra.mxu0 %v365
      %1348 = vmatpush.msra.mxu0 %v364
      %1349 = vmatmul.f32.gmra.mxu0 %v1331
      %v1350 = vpop.f32.mrf.mxu0
      %v1351 = vadd.f32 0.0, %v1350
      %1352 = vdwg.mxu0
      %v1354 = vrot.slane %v1351, 6
      %v1356 = vadd.f32 %v431, %v1354
      %v1357 = vadd.f32 %v1356, %v374
      %v1358 = vxor.u32 %v1357, 2147483648
      %v1359 = vmul.f32 %v1358, 1.442695
      %v1360 = vpow.pop %v1359
      %v1361 = vadd.f32 %v1360, 1.0
      %v1362 = vrcp.pop %v1361
      %v1363 = vmul.f32 %v1361, %v1362
      %v1364 = vsub.f32 1.0, %v1363
      %v1365 = vmul.f32 %v1362, %v1364
      %v1366 = vadd.f32 %v1362, %v1365
      %vm1367 = vweird.f32 %v1361
      %vm1368 = vweird.f32 %v1362
      %vm1369 = vmor %vm1367, %vm1368
      %v1370 = vsel %vm1369, %v1362, %v1366
      %v1371 = vand.u32 2147483647, %v1361
      %vm1372 = vcmp.eq.f32.partialorder %v1371, 8.507059e+37
      %v1373 = vand.u32 %v1361, 2147483648
      %v1374 = vor.u32 1.1754944e-38, %v1373
      %v1375 = vsel %vm1372, %v1374, %v1370
      %v1376 = vmul.f32 1.0, %v1375
      %v1377 = vtanh.pop %v1357
      %v1378 = vmul.f32 %v1376, %v1106
      %1380 = vrot.lane.b32.xlu0 %v1377, 64
      %v1381 = vpop.permute.xlu0 %1380
      %v1383 = vmul.f32 %v1376, %v1381
      %1385 = vrot.lane.b32.xlu0 %v1383, 32
      %v1386 = vpop.permute.xlu0 %1385
      %v1388 = vadd.f32 %v1378, %v1386
      %v1389 = vtanh.pop %v1388
      %1391 = vrot.lane.b32.xlu0 %v1389, 64
      %v1392 = vpop.permute.xlu0 %1391
      %v1394 = vmul.f32 %v1376, %v1392
      %v1396 = vrot.slane %v1394, 2
      %1397 = vrot.lane.b32.xlu0 %v1396, 32
      %v1398 = vpop.permute.xlu0 %1397
      %v1399 = vsel %vm433, %v1398, 0
      %1401 = vmatpush.msra.mxu0 0.0
      %1402 = vmatpush.msra.mxu0 0.0
      %1403 = vmatpush.msra.mxu0 0.0
      %1404 = vmatpush.msra.mxu0 0.0
      %1405 = vmatpush.msra.mxu0 0.0
      %1406 = vmatpush.msra.mxu0 0.0
      %1407 = vmatpush.msra.mxu0 0.0
      %1408 = vmatpush.msra.mxu0 0.0
      %1409 = vmatpush.msra.mxu0 0.0
      %1410 = vmatpush.msra.mxu0 0.0
      %1411 = vmatpush.msra.mxu0 0.0
      %1412 = vmatpush.msra.mxu0 0.0
      %1413 = vmatpush.msra.mxu0 %v367
      %1414 = vmatpush.msra.mxu0 %v366
      %1415 = vmatpush.msra.mxu0 %v365
      %1416 = vmatpush.msra.mxu0 %v364
      %1417 = vmatmul.f32.gmra.mxu0 %v1399
      %v1418 = vpop.f32.mrf.mxu0
      %v1419 = vadd.f32 0.0, %v1418
      %1420 = vdwg.mxu0
      %v1422 = vrot.slane %v1419, 4
      %v1424 = vadd.f32 %v431, %v1422
      %v1425 = vadd.f32 %v1424, %v374
      %v1426 = vxor.u32 %v1425, 2147483648
      %v1427 = vmul.f32 %v1426, 1.442695
      %v1428 = vpow.pop %v1427
      %v1429 = vadd.f32 %v1428, 1.0
      %v1430 = vrcp.pop %v1429
      %v1431 = vmul.f32 %v1429, %v1430
      %v1432 = vsub.f32 1.0, %v1431
      %v1433 = vmul.f32 %v1430, %v1432
      %v1434 = vadd.f32 %v1430, %v1433
      %vm1435 = vweird.f32 %v1429
      %vm1436 = vweird.f32 %v1430
      %vm1437 = vmor %vm1435, %vm1436
      %v1438 = vsel %vm1437, %v1430, %v1434
      %v1439 = vand.u32 2147483647, %v1429
      %vm1440 = vcmp.eq.f32.partialorder %v1439, 8.507059e+37
      %v1441 = vand.u32 %v1429, 2147483648
      %v1442 = vor.u32 1.1754944e-38, %v1441
      %v1443 = vsel %vm1440, %v1442, %v1438
      %v1444 = vmul.f32 1.0, %v1443
      %v1445 = vtanh.pop %v1425
      %v1446 = vmul.f32 %v1444, %v1176
      %1448 = vrot.lane.b32.xlu0 %v1445, 64
      %v1449 = vpop.permute.xlu0 %1448
      %v1451 = vmul.f32 %v1444, %v1449
      %1453 = vrot.lane.b32.xlu0 %v1451, 32
      %v1454 = vpop.permute.xlu0 %1453
      %v1456 = vadd.f32 %v1446, %v1454
      %v1457 = vtanh.pop %v1456
      %1459 = vrot.lane.b32.xlu0 %v1457, 64
      %v1460 = vpop.permute.xlu0 %1459
      %v1462 = vmul.f32 %v1444, %v1460
      %v1464 = vrot.slane %v1462, 4
      %1465 = vrot.lane.b32.xlu0 %v1464, 32
      %v1466 = vpop.permute.xlu0 %1465
      %v1467 = vsel %vm433, %v1466, 0
      %1469 = vmatpush.msra.mxu0 0.0
      %1470 = vmatpush.msra.mxu0 0.0
      %1471 = vmatpush.msra.mxu0 0.0
      %1472 = vmatpush.msra.mxu0 0.0
      %1473 = vmatpush.msra.mxu0 0.0
      %1474 = vmatpush.msra.mxu0 0.0
      %1475 = vmatpush.msra.mxu0 0.0
      %1476 = vmatpush.msra.mxu0 0.0
      %1477 = vmatpush.msra.mxu0 0.0
      %1478 = vmatpush.msra.mxu0 0.0
      %1479 = vmatpush.msra.mxu0 0.0
      %1480 = vmatpush.msra.mxu0 0.0
      %1481 = vmatpush.msra.mxu0 %v367
      %1482 = vmatpush.msra.mxu0 %v366
      %1483 = vmatpush.msra.mxu0 %v365
      %1484 = vmatpush.msra.mxu0 %v364
      %1485 = vmatmul.f32.gmra.mxu0 %v1467
      %v1486 = vpop.f32.mrf.mxu0
      %v1487 = vadd.f32 0.0, %v1486
      %1488 = vdwg.mxu0
      %v1490 = vrot.slane %v1487, 2
      %v1492 = vadd.f32 %v431, %v1490
      %v1493 = vadd.f32 %v1492, %v374
      %v1494 = vxor.u32 %v1493, 2147483648
      %v1495 = vmul.f32 %v1494, 1.442695
      %v1496 = vpow.pop %v1495
      %v1497 = vadd.f32 %v1496, 1.0
      %v1498 = vrcp.pop %v1497
      %v1499 = vmul.f32 %v1497, %v1498
      %v1500 = vsub.f32 1.0, %v1499
      %v1501 = vmul.f32 %v1498, %v1500
      %v1502 = vadd.f32 %v1498, %v1501
      %vm1503 = vweird.f32 %v1497
      %vm1504 = vweird.f32 %v1498
      %vm1505 = vmor %vm1503, %vm1504
      %v1506 = vsel %vm1505, %v1498, %v1502
      %v1507 = vand.u32 2147483647, %v1497
      %vm1508 = vcmp.eq.f32.partialorder %v1507, 8.507059e+37
      %v1509 = vand.u32 %v1497, 2147483648
      %v1510 = vor.u32 1.1754944e-38, %v1509
      %v1511 = vsel %vm1508, %v1510, %v1506
      %v1512 = vmul.f32 1.0, %v1511
      %v1513 = vtanh.pop %v1493
      %v1514 = vmul.f32 %v1512, %v981
      %1516 = vrot.lane.b32.xlu0 %v1513, 64
      %v1517 = vpop.permute.xlu0 %1516
      %v1519 = vmul.f32 %v1512, %v1517
      %1521 = vrot.lane.b32.xlu0 %v1519, 32
      %v1522 = vpop.permute.xlu0 %1521
      %v1524 = vadd.f32 %v1514, %v1522
      %v1525 = vtanh.pop %v1524
      %1527 = vrot.lane.b32.xlu0 %v1525, 64
      %v1528 = vpop.permute.xlu0 %1527
      %v1530 = vmul.f32 %v1512, %v1528
      %vm1531 = vcmask 1041408
      %v1532 = vsel %vm1531, %v495, %v565
      %vm1533 = vcmask 1043456
      %v1534 = vsel %vm1533, %v1532, %v636
      %vm1535 = vcmask 1045504
      %v1536 = vsel %vm1535, %v1534, %v707
      %v1537 = vsel %vm1531, %v775, %v845
      %v1538 = vsel %vm1533, %v1537, %v916
      %v1539 = vsel %vm1535, %v1538, %v987
      %v1540 = vsel %vm1531, %v1055, %v1124
      %v1541 = vsel %vm1533, %v1540, %v1194
      %v1542 = vsel %vm1535, %v1541, %v1262
      %v1543 = vsel %vm1531, %v1327, %v1394
      %v1544 = vsel %vm1533, %v1543, %v1462
      %v1545 = vsel %vm1535, %v1544, %v1530
      %v1546 = vld [vmem:[%s7] sm:$0xff]
      %v1547 = vld [vmem:[%s7 + $0x8] sm:$0xff]
      %v1548 = vld [vmem:[%s7 + $0x10] sm:$0xff]
      %v1549 = vld [vmem:[%s7 + $0x18] sm:$0xff]
      %1552 = vrot.lane.b32.xlu0 %v1536, 32
      %v1553 = vpop.permute.xlu0 %1552
      %1554 = vrot.lane.b32.xlu0 %v1539, 32
      %v1555 = vpop.permute.xlu0 %1554
      %v1556 = vsel %vm433, %v1553, 0
      %v1558 = vsel %vm433, %v1555, 0
      %1560 = vmatpush.msra.mxu0 0.0
      %1561 = vmatpush.msra.mxu0 0.0
      %1562 = vmatpush.msra.mxu0 0.0
      %1563 = vmatpush.msra.mxu0 0.0
      %1564 = vmatpush.msra.mxu0 0.0
      %1565 = vmatpush.msra.mxu0 0.0
      %1566 = vmatpush.msra.mxu0 0.0
      %1567 = vmatpush.msra.mxu0 0.0
      %1568 = vmatpush.msra.mxu0 0.0
      %1569 = vmatpush.msra.mxu0 0.0
      %1570 = vmatpush.msra.mxu0 0.0
      %1571 = vmatpush.msra.mxu0 0.0
      %1572 = vmatpush.msra.mxu0 %v1549
      %1573 = vmatpush.msra.mxu0 %v1548
      %1574 = vmatpush.msra.mxu0 %v1547
      %1575 = vmatpush.msra.mxu0 %v1546
      %1576 = vmatmul.f32.gmra.mxu0 %v1556
      %v1577 = vpop.f32.mrf.mxu0
      %v1578 = vadd.f32 0.0, %v1577
      %1579 = vmatmul.f32.gmra.mxu0 %v1558
      %v1580 = vpop.f32.mrf.mxu0
      %v1581 = vadd.f32 0.0, %v1580
      %1582 = vdwg.mxu0
      %v1583 = vld [vmem:[%s8] sm:$0xff]
      %v1584 = vld [vmem:[%s8 + $0x8] sm:$0xff]
      %v1585 = vld [vmem:[%s8 + $0x10] sm:$0xff]
      %v1586 = vld [vmem:[%s8 + $0x18] sm:$0xff]
      %v1588 = vrot.slane %v1578, 2
      %1589 = vrot.lane.b32.xlu0 %v1588, 16
      %v1590 = vpop.permute.xlu0 %1589
      %v1592 = vrot.slane %v1578, 4
      %1593 = vrot.lane.b32.xlu0 %v1592, 32
      %v1594 = vpop.permute.xlu0 %1593
      %v1596 = vrot.slane %v1578, 6
      %1597 = vrot.lane.b32.xlu0 %v1596, 48
      %v1598 = vpop.permute.xlu0 %1597
      %1601 = vrot.lane.b32.xlu0 %v1581, 64
      %v1602 = vpop.permute.xlu0 %1601
      %v1604 = vrot.slane %v1581, 2
      %1605 = vrot.lane.b32.xlu0 %v1604, 80
      %v1606 = vpop.permute.xlu0 %1605
      %v1608 = vrot.slane %v1581, 4
      %1609 = vrot.lane.b32.xlu0 %v1608, 96
      %v1610 = vpop.permute.xlu0 %1609
      %v1612 = vrot.slane %v1581, 6
      %1613 = vrot.lane.b32.xlu0 %v1612, 112
      %v1614 = vpop.permute.xlu0 %1613
      %vm1616 = vcmask 130048
      %v1617 = vsel %vm1616, %v1578, %v1590
      %v1618 = vsel %vm433, %v1617, %v1594
      %vm1619 = vcmask 392192
      %v1620 = vsel %vm1619, %v1618, %v1598
      %vm1621 = vcmask 523264
      %v1622 = vsel %vm1621, %v1620, %v1602
      %vm1623 = vcmask 654336
      %v1624 = vsel %vm1623, %v1622, %v1606
      %vm1625 = vcmask 785408
      %v1626 = vsel %vm1625, %v1624, %v1610
      %vm1627 = vcmask 916480
      %v1628 = vsel %vm1627, %v1626, %v1614
      %v1630 = vrot.slane %v1628, 6
      %v1632 = vrot.slane %v1628, 4
      %v1634 = vrot.slane %v1628, 2
      %v1636 = vsel %vm1531, %v1628, %v1630
      %v1637 = vsel %vm1533, %v1636, %v1632
      %v1638 = vsel %vm1535, %v1637, %v1634
      %1641 = vrot.lane.b32.xlu0 %v1542, 32
      %v1642 = vpop.permute.xlu0 %1641
      %1643 = vrot.lane.b32.xlu0 %v1545, 32
      %v1644 = vpop.permute.xlu0 %1643
      %v1645 = vsel %vm433, %v1642, 0
      %v1647 = vsel %vm433, %v1644, 0
      %1649 = vmatpush.msra.mxu0 0.0
      %1650 = vmatpush.msra.mxu0 0.0
      %1651 = vmatpush.msra.mxu0 0.0
      %1652 = vmatpush.msra.mxu0 0.0
      %1653 = vmatpush.msra.mxu0 0.0
      %1654 = vmatpush.msra.mxu0 0.0
      %1655 = vmatpush.msra.mxu0 0.0
      %1656 = vmatpush.msra.mxu0 0.0
      %1657 = vmatpush.msra.mxu0 0.0
      %1658 = vmatpush.msra.mxu0 0.0
      %1659 = vmatpush.msra.mxu0 0.0
      %1660 = vmatpush.msra.mxu0 0.0
      %1661 = vmatpush.msra.mxu0 %v1586
      %1662 = vmatpush.msra.mxu0 %v1585
      %1663 = vmatpush.msra.mxu0 %v1584
      %1664 = vmatpush.msra.mxu0 %v1583
      %1665 = vmatmul.f32.gmra.mxu0 %v1645
      %v1666 = vpop.f32.mrf.mxu0
      %v1667 = vadd.f32 %v1638, %v1666
      %1668 = vmatmul.f32.gmra.mxu0 %v1647
      %v1669 = vpop.f32.mrf.mxu0
      %v1670 = vadd.f32 %v1638, %v1669
      %1671 = vdwg.mxu0
      %v1672 = vtanh.pop %v1667
      %v1673 = vtanh.pop %v1670
      %v1674 = vld [vmem:[%s9] sm:$0xff]
      %v1675 = vld [vmem:[%s9 + $0x8] sm:$0xff]
      %v1676 = vld [vmem:[%s9 + $0x10] sm:$0xff]
      %v1677 = vld [vmem:[%s9 + $0x18] sm:$0xff]
      %v1678 = vld [vmem:[%s9 + $0x20] sm:$0xff]
      %v1679 = vld [vmem:[%s9 + $0x28] sm:$0xff]
      %v1680 = vld [vmem:[%s9 + $0x30] sm:$0xff]
      %v1681 = vld [vmem:[%s9 + $0x38] sm:$0xff]
      %v1682 = vld [vmem:[%s9 + $0x40] sm:$0xff]
      %v1683 = vld [vmem:[%s9 + $0x48] sm:$0xff]
      %v1684 = vld [vmem:[%s9 + $0x50] sm:$0xff]
      %v1685 = vld [vmem:[%s9 + $0x58] sm:$0xff]
      %v1686 = vld [vmem:[%s9 + $0x60] sm:$0xff]
      %v1687 = vld [vmem:[%s9 + $0x68] sm:$0xff]
      %v1688 = vld [vmem:[%s9 + $0x70] sm:$0xff]
      %v1689 = vld [vmem:[%s9 + $0x78] sm:$0xff]
      %1690 = vmatpush.msra.mxu0 %v1689
      %1691 = vmatpush.msra.mxu0 %v1688
      %1692 = vmatpush.msra.mxu0 %v1687
      %1693 = vmatpush.msra.mxu0 %v1686
      %1694 = vmatpush.msra.mxu0 %v1685
      %1695 = vmatpush.msra.mxu0 %v1684
      %1696 = vmatpush.msra.mxu0 %v1683
      %1697 = vmatpush.msra.mxu0 %v1682
      %1698 = vmatpush.msra.mxu0 %v1681
      %1699 = vmatpush.msra.mxu0 %v1680
      %1700 = vmatpush.msra.mxu0 %v1679
      %1701 = vmatpush.msra.mxu0 %v1678
      %1702 = vmatpush.msra.mxu0 %v1677
      %1703 = vmatpush.msra.mxu0 %v1676
      %1704 = vmatpush.msra.mxu0 %v1675
      %1705 = vmatpush.msra.mxu0 %v1674
      %1706 = vmatmul.f32.gmra.mxu0 %v1672
      %v1707 = vpop.f32.mrf.mxu0
      %v1708 = vadd.f32 0.0, %v1707
      %1709 = vmatmul.f32.gmra.mxu0 %v1673
      %v1710 = vpop.f32.mrf.mxu0
      %v1711 = vadd.f32 0.0, %v1710
      %1712 = vdwg.mxu0
      %v1713 = vsel %vm379, %v1708, -inf
      %1714 = vmax.xlane.f32.xlu0 %v1713
      %v1715 = vpop.xlane.xlu0 %1714
      %v1716 = vsel %vm379, %v1711, -inf
      %1717 = vmax.xlane.f32.xlu0 %v1716
      %v1718 = vpop.xlane.xlu0 %1717
      %v1719 = vsub.f32 %v1708, %v1715
      %v1720 = vsub.f32 %v1711, %v1718
      %v1721 = vmul.f32 %v1719, 1.442695
      %v1722 = vpow.pop %v1721
      %v1723 = vmul.f32 %v1720, 1.442695
      %v1724 = vpow.pop %v1723
      %v1725 = vsel %vm379, %v1722, 0.0
      %1726 = vadd.xlane.f32.xlu0 %v1725
      %v1727 = vpop.xlane.xlu0 %1726
      %v1728 = vsel %vm379, %v1724, 0.0
      %1729 = vadd.xlane.f32.xlu0 %v1728
      %v1730 = vpop.xlane.xlu0 %1729
      %v1731 = vlog2.pop %v1727
      %v1732 = vmul.f32 %v1731, 0.6931472
      %v1733 = vlog2.pop %v1730
      %v1734 = vmul.f32 %v1733, 0.6931472
      %v1735 = vsub.f32 %v1719, %v1732
      %v1736 = vsub.f32 %v1720, %v1734
      %1737 = vst.msk [vmem:[%s359] sm:$0xff] %vm379, %v1735
      %1738 = vst.msk [vmem:[%s359 + $0x8] sm:$0xff] %vm379, %v1736
      %p1739 = scmp.lt.s32.totalorder %s21, 1
      %s1740 = scalar_select %p1739, %s21, 1
      %s1741 = smul.addr %s1740, 2
      %s1742 = smul.addr %s1741, 8
      %s1743 = scalar_lea.vmem %s10, %s1742
      // Predicated region
      $region61: #{tpu_custom_call.1} parent=59 // pred_check
        %p1744 = pneg %p254
      $region62: #{tpu_custom_call.1} parent=59 // pred_check_branch
        %1746 = sbr.rel (%p1744) target = $region64
      $region63: #{tpu_custom_call.1} parent=59 // pred_region
        _
      $region64: #{tpu_custom_call.1} parent=59 // pred_fallthru
        _
    $region60: #{tpu_custom_call.1} parent=5 // pred_fallthru
      _
    %p1747 = scmp.le.s32.totalorder 2, %s16
    // Predicated region
    $region65: #{tpu_custom_call.1} parent=5 // pred_check
      %p1748 = pneg %p1747
    $region66: #{tpu_custom_call.1} parent=5 // pred_check_branch
      %1750 = sbr.rel (%p1748) target = $region68
    $region67: #{tpu_custom_call.1} parent=5 // pred_region
      %s1751 = ssub.s32 %s16, 2
      // Predicated region
      $region69: #{tpu_custom_call.1} parent=67 // pred_check
        %p1752 = pneg %p260
      $region70: #{tpu_custom_call.1} parent=67 // pred_check_branch
        %1754 = sbr.rel (%p1752) target = $region72
      $region71: #{tpu_custom_call.1} parent=67 // pred_region
        %p1755 = scmp.lt.s32.totalorder %s22, 1
        %s1756 = scalar_select %p1755, %s22, 1
        %s1757 = smul.addr %s1756, 2
        %s1758 = smul.addr %s1757, 8
        %s1759 = scalar_lea.vmem %s10, %s1758
      $region72: #{tpu_custom_call.1} parent=67 // pred_fallthru
        _
    $region68: #{tpu_custom_call.1} parent=5 // pred_fallthru
      _
  $region6: #{tpu_custom_call.1} parent=0 // loop_footer
    %s20 = sadd.s32 1, %s16
  $region7: #{tpu_custom_call.1} parent=0 // loop_footer_branch
    %15 = sbr.rel target = $region3
  $region8: #{tpu_custom_call.1} parent=0 // loop_exit
    _

</llo_original>
